<compile_context>
chip_gen: v6e
topology: v6e:2x2x1
jax: 0.10.0
libtpu: 0.0.40
codegen_flags: <defaults>
</compile_context>

<pallas_src>
import functools

import numpy as np
import jax
import jax.numpy as jnp
from jax.experimental import pallas as pl
from jax.experimental.pallas import tpu as pltpu

LRELU_SLOPE = 0.1
PERIODS = (2, 3, 5, 7, 11)

CHANNELS = (1, 8, 16, 32, 32, 32)   # reduced widths (real HiFi-GAN: 32..1024)
KSIZE = 5
STRIDES = (3, 3, 3, 3, 1)
POST_K = 3
N_LAYERS = len(STRIDES) + 1          # 5 convs + conv_post


def _fused_stack_kernel(x_ref, *refs, n_layers):
    """Whole PeriodDescriminator conv stack for one signal (gt or gen).

    x_ref : (1, M, H0*C0)  input rows for this grid step (signal)
    refs  : n_layers dense conv matrices G_l (D_{l-1}, D_l),
            n_layers biases               (1, D_l),
            n_layers outputs              (1, M, D_l)  (post-activation fmaps).
    """
    g_refs = refs[:n_layers]
    b_refs = refs[n_layers:2 * n_layers]
    o_refs = refs[2 * n_layers:]

    h = x_ref[0]                                       # (M, D0), stays on-chip
    for l in range(n_layers):
        h = jnp.dot(h, g_refs[l][...], preferred_element_type=jnp.float32)
        h = h + b_refs[l][...]
        if l < n_layers - 1:                           # conv_post: no activation
            h = jnp.where(h > 0, h, LRELU_SLOPE * h)
        o_refs[l][0] = h.astype(o_refs[l].dtype)


def _conv_to_dense(w, b, h_in, stride, padding):
    """Fold a (K,1) Conv2d (stride (s,1), pad (p,0)) into one dense GEMM matrix.

    Host-side weight prep (static shapes, tiny matrices -- not in the hot path).
    w: (C_out, C_in, K) torch-layout weight, b: (C_out,).
    Returns G (H_in*C_in, H_out*C_out), b_flat (1, H_out*C_out), H_out, where
      out[m, ho*C_out + co] = sum_{hi,ci} x[m, hi*C_in + ci] * G[.., ..] + b[co]
    reproduces the conv (padding zeros contribute nothing, so they are simply
    omitted from G).
    """
    w_np = np.asarray(w)
    b_np = np.asarray(b)
    c_out, c_in, k = w_np.shape
    h_out = (h_in + 2 * padding - k) // stride + 1
    g = np.zeros((h_in, c_in, h_out, c_out), np.float32)
    for ho in range(h_out):
        for dk in range(k):
            hi = ho * stride + dk - padding
            if 0 <= hi < h_in:
                g[hi, :, ho, :] += w_np[:, :, dk].T
    g = g.reshape(h_in * c_in, h_out * c_out)
    b_flat = np.tile(b_np, h_out).reshape(1, h_out * c_out)
    return jnp.asarray(g), jnp.asarray(b_flat), h_out


def init_period_disc_params(key):
    """Deterministic synthetic weights (weight_norm folded into plain conv weights)."""
    params = []
    for i in range(len(STRIDES)):
        c_in, c_out = CHANNELS[i], CHANNELS[i + 1]
        key, k1, k2 = jax.random.split(key, 3)
        w = jax.random.normal(k1, (c_out, c_in, KSIZE), jnp.float32)
        w = w * (1.0 / jnp.sqrt(float(c_in * KSIZE)))
        bb = jax.random.normal(k2, (c_out,), jnp.float32) * 0.01
        params.append((w, bb))
    key, k1, k2 = jax.random.split(key, 3)
    wp = jax.random.normal(k1, (1, CHANNELS[-1], POST_K), jnp.float32)
    wp = wp * (1.0 / jnp.sqrt(float(CHANNELS[-1] * POST_K)))
    bp = jax.random.normal(k2, (1,), jnp.float32) * 0.01
    params.append((wp, bp))
    return params


def period_discriminator_forward_pair(gen, gt, params, period):
    """One PeriodDescriminator applied to gt (grid step 0) and gen (grid step 1).

    Returns ((gt_score, gt_fmaps), (gen_score, gen_fmaps)); fmaps in torch NCHW.
    """
    B, C, T = gen.shape
    if T % period != 0:
        n_pad = period - (T % period)
        gen = jnp.pad(gen, ((0, 0), (0, 0), (0, n_pad)), mode="reflect")
        gt = jnp.pad(gt, ((0, 0), (0, 0), (0, n_pad)), mode="reflect")
        T = T + n_pad
    h0 = T // period
    m = B * period

    def to_flat(x):                                    # (B,1,T) -> (M, H0*C)
        x = x.reshape(B, C, h0, period)                # NCHW, W = period
        return jnp.transpose(x, (0, 3, 2, 1)).reshape(m, h0 * C)

    x2 = jnp.stack([to_flat(gt), to_flat(gen)], axis=0)   # (2, M, D0)

    # Host-side weight prep: fold every conv of this stack into a dense GEMM.
    gmats, bvecs, h_sizes, c_sizes = [], [], [], []
    h_cur = h0
    for i in range(len(STRIDES)):
        w, b = params[i]
        g, bf, h_cur = _conv_to_dense(w, b, h_cur, STRIDES[i], (KSIZE - 1) // 2)
        gmats.append(g)
        bvecs.append(bf)
        h_sizes.append(h_cur)
        c_sizes.append(CHANNELS[i + 1])
    wp, bp = params[-1]
    g, bf, h_cur = _conv_to_dense(wp, bp, h_cur, 1, (POST_K - 1) // 2)
    gmats.append(g)
    bvecs.append(bf)
    h_sizes.append(h_cur)
    c_sizes.append(1)

    d_outs = [h_sizes[l] * c_sizes[l] for l in range(N_LAYERS)]
    d0 = h0 * C

    kernel = functools.partial(_fused_stack_kernel, n_layers=N_LAYERS)
    outs = pl.pallas_call(
        kernel,
        out_shape=tuple(jax.ShapeDtypeStruct((2, m, d), jnp.float32)
                        for d in d_outs),
        grid=(2,),                                     # step 0 = gt, step 1 = gen
        in_specs=[pl.BlockSpec((1, m, d0), lambda s: (s, 0, 0))]
                 + [pl.BlockSpec(g.shape, lambda s: (0, 0)) for g in gmats]
                 + [pl.BlockSpec(bf.shape, lambda s: (0, 0)) for bf in bvecs],
        out_specs=tuple(pl.BlockSpec((1, m, d), lambda s: (s, 0, 0))
                        for d in d_outs),
        compiler_params=pltpu.CompilerParams(
            dimension_semantics=("parallel",)),        # gt/gen across TCs on v7x
    )(x2, *gmats, *bvecs)

    def to_nchw(flat, h_l, c_l):                       # (M, H*C) -> (B, C, H, W)
        return jnp.transpose(flat.reshape(B, period, h_l, c_l), (0, 3, 2, 1))

    gt_fmaps = [to_nchw(outs[l][0], h_sizes[l], c_sizes[l])
                for l in range(N_LAYERS)]
    gen_fmaps = [to_nchw(outs[l][1], h_sizes[l], c_sizes[l])
                 for l in range(N_LAYERS)]
    gt_score = gt_fmaps[-1].reshape(B, -1)             # torch.flatten(x, 1, -1)
    gen_score = gen_fmaps[-1].reshape(B, -1)
    return (gt_score, gt_fmaps), (gen_score, gen_fmaps)


def multi_period_discriminator_forward(gen, gt, all_params):
    """Mirrors MultiPeriodDescriminator.forward: returns (gt_sc, gen_sc, gt_ft, gen_ft)."""
    gt_sc, gen_sc, gt_ft, gen_ft = [], [], [], []
    for period, params in zip(PERIODS, all_params):
        (gt_out, gt_feat), (gen_out, gen_feat) = \
            period_discriminator_forward_pair(gen, gt, params, period)
        gt_ft.extend(gt_feat)
        gen_ft.extend(gen_feat)
        gt_sc.append(gt_out)
        gen_sc.append(gen_out)
    return gt_sc, gen_sc, gt_ft, gen_ft


if __name__ == "__main__":
    key = jax.random.PRNGKey(0)
    kparams, kgen, kgt = jax.random.split(key, 3)
    all_params = [init_period_disc_params(jax.random.fold_in(kparams, i))
                  for i in range(len(PERIODS))]

    B, T = 2, 64
    gen = jax.random.normal(kgen, (B, 1, T), jnp.float32)
    gt = jax.random.normal(kgt, (B, 1, T), jnp.float32)

    result = multi_period_discriminator_forward(gen, gt, all_params)
    jax.block_until_ready(result)
    print("KERNEL_OK")
</pallas_src>

<mosaic_0001>
module attributes {stable_mosaic.version = 11 : i64} {
  func.func @_fused_stack_kernel(%arg0: i32, %arg1: memref<1x4x32xf32, #tpu.memory_space<vmem>>, %arg2: memref<32x88xf32, #tpu.memory_space<vmem>>, %arg3: memref<88x64xf32, #tpu.memory_space<vmem>>, %arg4: memref<64x64xf32, #tpu.memory_space<vmem>>, %arg5: memref<64x32xf32, #tpu.memory_space<vmem>>, %arg6: memref<32x32xf32, #tpu.memory_space<vmem>>, %arg7: memref<32x1xf32, #tpu.memory_space<vmem>>, %arg8: memref<1x88xf32, #tpu.memory_space<vmem>>, %arg9: memref<1x64xf32, #tpu.memory_space<vmem>>, %arg10: memref<1x64xf32, #tpu.memory_space<vmem>>, %arg11: memref<1x32xf32, #tpu.memory_space<vmem>>, %arg12: memref<1x32xf32, #tpu.memory_space<vmem>>, %arg13: memref<1x1xf32, #tpu.memory_space<vmem>>, %arg14: memref<1x4x88xf32, #tpu.memory_space<vmem>>, %arg15: memref<1x4x64xf32, #tpu.memory_space<vmem>>, %arg16: memref<1x4x64xf32, #tpu.memory_space<vmem>>, %arg17: memref<1x4x32xf32, #tpu.memory_space<vmem>>, %arg18: memref<1x4x32xf32, #tpu.memory_space<vmem>>, %arg19: memref<1x4x1xf32, #tpu.memory_space<vmem>>) attributes {dimension_semantics = [#tpu.dimension_semantics<parallel>], iteration_bounds = array<i64: 2>, scalar_prefetch = 0 : i64, scratch_operands = 0 : i64, tpu.core_type = #tpu.core_type<tc>, window_params = [{transform_indices = @transform_0, window_bounds = array<i64: 1, 4, 32>}, {pipeline_mode = #tpu.pipeline_mode<synchronous>, transform_indices = @transform_1, window_bounds = array<i64: 32, 88>}, {pipeline_mode = #tpu.pipeline_mode<synchronous>, transform_indices = @transform_2, window_bounds = array<i64: 88, 64>}, {pipeline_mode = #tpu.pipeline_mode<synchronous>, transform_indices = @transform_3, window_bounds = array<i64: 64, 64>}, {pipeline_mode = #tpu.pipeline_mode<synchronous>, transform_indices = @transform_4, window_bounds = array<i64: 64, 32>}, {pipeline_mode = #tpu.pipeline_mode<synchronous>, transform_indices = @transform_5, window_bounds = array<i64: 32, 32>}, {pipeline_mode = #tpu.pipeline_mode<synchronous>, transform_indices = @transform_6, window_bounds = array<i64: 32, 1>}, {pipeline_mode = #tpu.pipeline_mode<synchronous>, transform_indices = @transform_7, window_bounds = array<i64: 1, 88>}, {pipeline_mode = #tpu.pipeline_mode<synchronous>, transform_indices = @transform_8, window_bounds = array<i64: 1, 64>}, {pipeline_mode = #tpu.pipeline_mode<synchronous>, transform_indices = @transform_9, window_bounds = array<i64: 1, 64>}, {pipeline_mode = #tpu.pipeline_mode<synchronous>, transform_indices = @transform_10, window_bounds = array<i64: 1, 32>}, {pipeline_mode = #tpu.pipeline_mode<synchronous>, transform_indices = @transform_11, window_bounds = array<i64: 1, 32>}, {pipeline_mode = #tpu.pipeline_mode<synchronous>, transform_indices = @transform_12, window_bounds = array<i64: 1, 1>}, {transform_indices = @transform_13, window_bounds = array<i64: 1, 4, 88>}, {transform_indices = @transform_14, window_bounds = array<i64: 1, 4, 64>}, {transform_indices = @transform_15, window_bounds = array<i64: 1, 4, 64>}, {transform_indices = @transform_16, window_bounds = array<i64: 1, 4, 32>}, {transform_indices = @transform_17, window_bounds = array<i64: 1, 4, 32>}, {transform_indices = @transform_18, window_bounds = array<i64: 1, 4, 1>}]} {
    %c0 = arith.constant 0 : index
    %c0_0 = arith.constant 0 : index
    %c0_1 = arith.constant 0 : index
    %0 = vector.load %arg1[%c0, %c0_0, %c0_1] : memref<1x4x32xf32, #tpu.memory_space<vmem>>, vector<1x4x32xf32>
    %1 = vector.shape_cast %0 : vector<1x4x32xf32> to vector<4x32xf32>
    %c0_2 = arith.constant 0 : index
    %c0_3 = arith.constant 0 : index
    %2 = vector.load %arg2[%c0_2, %c0_3] : memref<32x88xf32, #tpu.memory_space<vmem>>, vector<32x88xf32>
    %cst = arith.constant dense<0.000000e+00> : vector<4x88xf32>
    %3 = tpu.matmul %1, %2, %cst {dimension_numbers = #tpu.dot_dimension_numbers<[1], [0], [0], [1], [0, 0, 1, 1], [], []>} : vector<4x32xf32>, vector<32x88xf32>, vector<4x88xf32> -> vector<4x88xf32>
    %c0_4 = arith.constant 0 : index
    %c0_5 = arith.constant 0 : index
    %4 = vector.load %arg8[%c0_4, %c0_5] : memref<1x88xf32, #tpu.memory_space<vmem>>, vector<1x88xf32>
    %5 = vector.broadcast %4 : vector<1x88xf32> to vector<4x88xf32>
    %6 = arith.addf %3, %5 : vector<4x88xf32>
    %cst_6 = arith.constant 0.000000e+00 : f32
    %7 = vector.broadcast %cst_6 : f32 to vector<4x88xf32>
    %8 = arith.cmpf ogt, %6, %7 : vector<4x88xf32>
    %cst_7 = arith.constant 1.000000e-01 : f32
    %9 = vector.broadcast %cst_7 : f32 to vector<4x88xf32>
    %10 = arith.mulf %9, %6 : vector<4x88xf32>
    %11 = arith.select %8, %6, %10 : vector<4x88xi1>, vector<4x88xf32>
    %c0_8 = arith.constant 0 : index
    %c0_9 = arith.constant 0 : index
    %c0_10 = arith.constant 0 : index
    %12 = vector.load %arg14[%c0_8, %c0_9, %c0_10] : memref<1x4x88xf32, #tpu.memory_space<vmem>>, vector<1x4x88xf32>
    %13 = vector.shape_cast %12 : vector<1x4x88xf32> to vector<4x88xf32>
    %14 = vector.shape_cast %11 : vector<4x88xf32> to vector<1x4x88xf32>
    tpu.vector_store %arg14[%c0_8, %c0_9, %c0_10], %14 {strides = array<i32>} : memref<1x4x88xf32, #tpu.memory_space<vmem>>, vector<1x4x88xf32>,
    %c0_11 = arith.constant 0 : index
    %c0_12 = arith.constant 0 : index
    %15 = vector.load %arg3[%c0_11, %c0_12] : memref<88x64xf32, #tpu.memory_space<vmem>>, vector<88x64xf32>
    %cst_13 = arith.constant dense<0.000000e+00> : vector<4x64xf32>
    %16 = tpu.matmul %11, %15, %cst_13 {dimension_numbers = #tpu.dot_dimension_numbers<[1], [0], [0], [1], [0, 0, 1, 1], [], []>} : vector<4x88xf32>, vector<88x64xf32>, vector<4x64xf32> -> vector<4x64xf32>
    %c0_14 = arith.constant 0 : index
    %c0_15 = arith.constant 0 : index
    %17 = vector.load %arg9[%c0_14, %c0_15] : memref<1x64xf32, #tpu.memory_space<vmem>>, vector<1x64xf32>
    %18 = vector.broadcast %17 : vector<1x64xf32> to vector<4x64xf32>
    %19 = arith.addf %16, %18 : vector<4x64xf32>
    %cst_16 = arith.constant 0.000000e+00 : f32
    %20 = vector.broadcast %cst_16 : f32 to vector<4x64xf32>
    %21 = arith.cmpf ogt, %19, %20 : vector<4x64xf32>
    %cst_17 = arith.constant 1.000000e-01 : f32
    %22 = vector.broadcast %cst_17 : f32 to vector<4x64xf32>
    %23 = arith.mulf %22, %19 : vector<4x64xf32>
    %24 = arith.select %21, %19, %23 : vector<4x64xi1>, vector<4x64xf32>
    %c0_18 = arith.constant 0 : index
    %c0_19 = arith.constant 0 : index
    %c0_20 = arith.constant 0 : index
    %25 = vector.load %arg15[%c0_18, %c0_19, %c0_20] : memref<1x4x64xf32, #tpu.memory_space<vmem>>, vector<1x4x64xf32>
    %26 = vector.shape_cast %25 : vector<1x4x64xf32> to vector<4x64xf32>
    %27 = vector.shape_cast %24 : vector<4x64xf32> to vector<1x4x64xf32>
    tpu.vector_store %arg15[%c0_18, %c0_19, %c0_20], %27 {strides = array<i32>} : memref<1x4x64xf32, #tpu.memory_space<vmem>>, vector<1x4x64xf32>,
    %c0_21 = arith.constant 0 : index
    %c0_22 = arith.constant 0 : index
    %28 = vector.load %arg4[%c0_21, %c0_22] : memref<64x64xf32, #tpu.memory_space<vmem>>, vector<64x64xf32>
    %cst_23 = arith.constant dense<0.000000e+00> : vector<4x64xf32>
    %29 = tpu.matmul %24, %28, %cst_23 {dimension_numbers = #tpu.dot_dimension_numbers<[1], [0], [0], [1], [0, 0, 1, 1], [], []>} : vector<4x64xf32>, vector<64x64xf32>, vector<4x64xf32> -> vector<4x64xf32>
    %c0_24 = arith.constant 0 : index
    %c0_25 = arith.constant 0 : index
    %30 = vector.load %arg10[%c0_24, %c0_25] : memref<1x64xf32, #tpu.memory_space<vmem>>, vector<1x64xf32>
    %31 = vector.broadcast %30 : vector<1x64xf32> to vector<4x64xf32>
    %32 = arith.addf %29, %31 : vector<4x64xf32>
    %cst_26 = arith.constant 0.000000e+00 : f32
    %33 = vector.broadcast %cst_26 : f32 to vector<4x64xf32>
    %34 = arith.cmpf ogt, %32, %33 : vector<4x64xf32>
    %cst_27 = arith.constant 1.000000e-01 : f32
    %35 = vector.broadcast %cst_27 : f32 to vector<4x64xf32>
    %36 = arith.mulf %35, %32 : vector<4x64xf32>
    %37 = arith.select %34, %32, %36 : vector<4x64xi1>, vector<4x64xf32>
    %c0_28 = arith.constant 0 : index
    %c0_29 = arith.constant 0 : index
    %c0_30 = arith.constant 0 : index
    %38 = vector.load %arg16[%c0_28, %c0_29, %c0_30] : memref<1x4x64xf32, #tpu.memory_space<vmem>>, vector<1x4x64xf32>
    %39 = vector.shape_cast %38 : vector<1x4x64xf32> to vector<4x64xf32>
    %40 = vector.shape_cast %37 : vector<4x64xf32> to vector<1x4x64xf32>
    tpu.vector_store %arg16[%c0_28, %c0_29, %c0_30], %40 {strides = array<i32>} : memref<1x4x64xf32, #tpu.memory_space<vmem>>, vector<1x4x64xf32>,
    %c0_31 = arith.constant 0 : index
    %c0_32 = arith.constant 0 : index
    %41 = vector.load %arg5[%c0_31, %c0_32] : memref<64x32xf32, #tpu.memory_space<vmem>>, vector<64x32xf32>
    %cst_33 = arith.constant dense<0.000000e+00> : vector<4x32xf32>
    %42 = tpu.matmul %37, %41, %cst_33 {dimension_numbers = #tpu.dot_dimension_numbers<[1], [0], [0], [1], [0, 0, 1, 1], [], []>} : vector<4x64xf32>, vector<64x32xf32>, vector<4x32xf32> -> vector<4x32xf32>
    %c0_34 = arith.constant 0 : index
    %c0_35 = arith.constant 0 : index
    %43 = vector.load %arg11[%c0_34, %c0_35] : memref<1x32xf32, #tpu.memory_space<vmem>>, vector<1x32xf32>
    %44 = vector.broadcast %43 : vector<1x32xf32> to vector<4x32xf32>
    %45 = arith.addf %42, %44 : vector<4x32xf32>
    %cst_36 = arith.constant 0.000000e+00 : f32
    %46 = vector.broadcast %cst_36 : f32 to vector<4x32xf32>
    %47 = arith.cmpf ogt, %45, %46 : vector<4x32xf32>
    %cst_37 = arith.constant 1.000000e-01 : f32
    %48 = vector.broadcast %cst_37 : f32 to vector<4x32xf32>
    %49 = arith.mulf %48, %45 : vector<4x32xf32>
    %50 = arith.select %47, %45, %49 : vector<4x32xi1>, vector<4x32xf32>
    %c0_38 = arith.constant 0 : index
    %c0_39 = arith.constant 0 : index
    %c0_40 = arith.constant 0 : index
    %51 = vector.load %arg17[%c0_38, %c0_39, %c0_40] : memref<1x4x32xf32, #tpu.memory_space<vmem>>, vector<1x4x32xf32>
    %52 = vector.shape_cast %51 : vector<1x4x32xf32> to vector<4x32xf32>
    %53 = vector.shape_cast %50 : vector<4x32xf32> to vector<1x4x32xf32>
    tpu.vector_store %arg17[%c0_38, %c0_39, %c0_40], %53 {strides = array<i32>} : memref<1x4x32xf32, #tpu.memory_space<vmem>>, vector<1x4x32xf32>,
    %c0_41 = arith.constant 0 : index
    %c0_42 = arith.constant 0 : index
    %54 = vector.load %arg6[%c0_41, %c0_42] : memref<32x32xf32, #tpu.memory_space<vmem>>, vector<32x32xf32>
    %cst_43 = arith.constant dense<0.000000e+00> : vector<4x32xf32>
    %55 = tpu.matmul %50, %54, %cst_43 {dimension_numbers = #tpu.dot_dimension_numbers<[1], [0], [0], [1], [0, 0, 1, 1], [], []>} : vector<4x32xf32>, vector<32x32xf32>, vector<4x32xf32> -> vector<4x32xf32>
    %c0_44 = arith.constant 0 : index
    %c0_45 = arith.constant 0 : index
    %56 = vector.load %arg12[%c0_44, %c0_45] : memref<1x32xf32, #tpu.memory_space<vmem>>, vector<1x32xf32>
    %57 = vector.broadcast %56 : vector<1x32xf32> to vector<4x32xf32>
    %58 = arith.addf %55, %57 : vector<4x32xf32>
    %cst_46 = arith.constant 0.000000e+00 : f32
    %59 = vector.broadcast %cst_46 : f32 to vector<4x32xf32>
    %60 = arith.cmpf ogt, %58, %59 : vector<4x32xf32>
    %cst_47 = arith.constant 1.000000e-01 : f32
    %61 = vector.broadcast %cst_47 : f32 to vector<4x32xf32>
    %62 = arith.mulf %61, %58 : vector<4x32xf32>
    %63 = arith.select %60, %58, %62 : vector<4x32xi1>, vector<4x32xf32>
    %c0_48 = arith.constant 0 : index
    %c0_49 = arith.constant 0 : index
    %c0_50 = arith.constant 0 : index
    %64 = vector.load %arg18[%c0_48, %c0_49, %c0_50] : memref<1x4x32xf32, #tpu.memory_space<vmem>>, vector<1x4x32xf32>
    %65 = vector.shape_cast %64 : vector<1x4x32xf32> to vector<4x32xf32>
    %66 = vector.shape_cast %63 : vector<4x32xf32> to vector<1x4x32xf32>
    tpu.vector_store %arg18[%c0_48, %c0_49, %c0_50], %66 {strides = array<i32>} : memref<1x4x32xf32, #tpu.memory_space<vmem>>, vector<1x4x32xf32>,
    %c0_51 = arith.constant 0 : index
    %c0_52 = arith.constant 0 : index
    %67 = vector.load %arg7[%c0_51, %c0_52] : memref<32x1xf32, #tpu.memory_space<vmem>>, vector<32x1xf32>
    %cst_53 = arith.constant dense<0.000000e+00> : vector<4x1xf32>
    %68 = tpu.matmul %63, %67, %cst_53 {dimension_numbers = #tpu.dot_dimension_numbers<[1], [0], [0], [1], [0, 0, 1, 1], [], []>} : vector<4x32xf32>, vector<32x1xf32>, vector<4x1xf32> -> vector<4x1xf32>
    %c0_54 = arith.constant 0 : index
    %c0_55 = arith.constant 0 : index
    %69 = vector.load %arg13[%c0_54, %c0_55] : memref<1x1xf32, #tpu.memory_space<vmem>>, vector<1x1xf32>
    %70 = vector.broadcast %69 : vector<1x1xf32> to vector<4x1xf32>
    %71 = arith.addf %68, %70 : vector<4x1xf32>
    %c0_56 = arith.constant 0 : index
    %c0_57 = arith.constant 0 : index
    %c0_58 = arith.constant 0 : index
    %72 = vector.load %arg19[%c0_56, %c0_57, %c0_58] : memref<1x4x1xf32, #tpu.memory_space<vmem>>, vector<1x4x1xf32>
    %73 = vector.shape_cast %72 : vector<1x4x1xf32> to vector<4x1xf32>
    %74 = vector.shape_cast %71 : vector<4x1xf32> to vector<1x4x1xf32>
    tpu.vector_store %arg19[%c0_56, %c0_57, %c0_58], %74 {strides = array<i32>} : memref<1x4x1xf32, #tpu.memory_space<vmem>>, vector<1x4x1xf32>,
    return
  }
  func.func @transform_0(%arg0: i32) -> (i32, i32, i32) {
    %c0_i32 = arith.constant 0 : i32
    %c0_i32_0 = arith.constant 0 : i32
    %c0_i32_1 = arith.constant 0 : i32
    return %arg0, %c0_i32, %c0_i32_0 : i32, i32, i32
  }
  func.func @transform_1(%arg0: i32) -> (i32, i32) {
    %c0_i32 = arith.constant 0 : i32
    %c0_i32_0 = arith.constant 0 : i32
    %c0_i32_1 = arith.constant 0 : i32
    return %c0_i32, %c0_i32_0 : i32, i32
  }
  func.func @transform_2(%arg0: i32) -> (i32, i32) {
    %c0_i32 = arith.constant 0 : i32
    %c0_i32_0 = arith.constant 0 : i32
    %c0_i32_1 = arith.constant 0 : i32
    return %c0_i32, %c0_i32_0 : i32, i32
  }
  func.func @transform_3(%arg0: i32) -> (i32, i32) {
    %c0_i32 = arith.constant 0 : i32
    %c0_i32_0 = arith.constant 0 : i32
    %c0_i32_1 = arith.constant 0 : i32
    return %c0_i32, %c0_i32_0 : i32, i32
  }
  func.func @transform_4(%arg0: i32) -> (i32, i32) {
    %c0_i32 = arith.constant 0 : i32
    %c0_i32_0 = arith.constant 0 : i32
    %c0_i32_1 = arith.constant 0 : i32
    return %c0_i32, %c0_i32_0 : i32, i32
  }
  func.func @transform_5(%arg0: i32) -> (i32, i32) {
    %c0_i32 = arith.constant 0 : i32
    %c0_i32_0 = arith.constant 0 : i32
    %c0_i32_1 = arith.constant 0 : i32
    return %c0_i32, %c0_i32_0 : i32, i32
  }
  func.func @transform_6(%arg0: i32) -> (i32, i32) {
    %c0_i32 = arith.constant 0 : i32
    %c0_i32_0 = arith.constant 0 : i32
    %c0_i32_1 = arith.constant 0 : i32
    return %c0_i32, %c0_i32_0 : i32, i32
  }
  func.func @transform_7(%arg0: i32) -> (i32, i32) {
    %c0_i32 = arith.constant 0 : i32
    %c0_i32_0 = arith.constant 0 : i32
    %c0_i32_1 = arith.constant 0 : i32
    return %c0_i32, %c0_i32_0 : i32, i32
  }
  func.func @transform_8(%arg0: i32) -> (i32, i32) {
    %c0_i32 = arith.constant 0 : i32
    %c0_i32_0 = arith.constant 0 : i32
    %c0_i32_1 = arith.constant 0 : i32
    return %c0_i32, %c0_i32_0 : i32, i32
  }
  func.func @transform_9(%arg0: i32) -> (i32, i32) {
    %c0_i32 = arith.constant 0 : i32
    %c0_i32_0 = arith.constant 0 : i32
    %c0_i32_1 = arith.constant 0 : i32
    return %c0_i32, %c0_i32_0 : i32, i32
  }
  func.func @transform_10(%arg0: i32) -> (i32, i32) {
    %c0_i32 = arith.constant 0 : i32
    %c0_i32_0 = arith.constant 0 : i32
    %c0_i32_1 = arith.constant 0 : i32
    return %c0_i32, %c0_i32_0 : i32, i32
  }
  func.func @transform_11(%arg0: i32) -> (i32, i32) {
    %c0_i32 = arith.constant 0 : i32
    %c0_i32_0 = arith.constant 0 : i32
    %c0_i32_1 = arith.constant 0 : i32
    return %c0_i32, %c0_i32_0 : i32, i32
  }
  func.func @transform_12(%arg0: i32) -> (i32, i32) {
    %c0_i32 = arith.constant 0 : i32
    %c0_i32_0 = arith.constant 0 : i32
    %c0_i32_1 = arith.constant 0 : i32
    return %c0_i32, %c0_i32_0 : i32, i32
  }
  func.func @transform_13(%arg0: i32) -> (i32, i32, i32) {
    %c0_i32 = arith.constant 0 : i32
    %c0_i32_0 = arith.constant 0 : i32
    %c0_i32_1 = arith.constant 0 : i32
    return %arg0, %c0_i32, %c0_i32_0 : i32, i32, i32
  }
  func.func @transform_14(%arg0: i32) -> (i32, i32, i32) {
    %c0_i32 = arith.constant 0 : i32
    %c0_i32_0 = arith.constant 0 : i32
    %c0_i32_1 = arith.constant 0 : i32
    return %arg0, %c0_i32, %c0_i32_0 : i32, i32, i32
  }
  func.func @transform_15(%arg0: i32) -> (i32, i32, i32) {
    %c0_i32 = arith.constant 0 : i32
    %c0_i32_0 = arith.constant 0 : i32
    %c0_i32_1 = arith.constant 0 : i32
    return %arg0, %c0_i32, %c0_i32_0 : i32, i32, i32
  }
  func.func @transform_16(%arg0: i32) -> (i32, i32, i32) {
    %c0_i32 = arith.constant 0 : i32
    %c0_i32_0 = arith.constant 0 : i32
    %c0_i32_1 = arith.constant 0 : i32
    return %arg0, %c0_i32, %c0_i32_0 : i32, i32, i32
  }
  func.func @transform_17(%arg0: i32) -> (i32, i32, i32) {
    %c0_i32 = arith.constant 0 : i32
    %c0_i32_0 = arith.constant 0 : i32
    %c0_i32_1 = arith.constant 0 : i32
    return %arg0, %c0_i32, %c0_i32_0 : i32, i32, i32
  }
  func.func @transform_18(%arg0: i32) -> (i32, i32, i32) {
    %c0_i32 = arith.constant 0 : i32
    %c0_i32_0 = arith.constant 0 : i32
    %c0_i32_1 = arith.constant 0 : i32
    return %arg0, %c0_i32, %c0_i32_0 : i32, i32, i32
  }
}

</mosaic_0001>

<llo_original>
// kernel: tpu_custom_call.1
$region0: #{tpu_custom_call.1}
  #allocation0 [shape = 'u32[]', space=smem, size = 0x4, offset = 0x4, fixed_abs, tag = 'smem constant byte address 0x4 - core index']
  #allocation1 [shape = 'u32[144,128]{1,0:T(1,128)}', space=vmem, size = 0x12000, scoped, tag = 'internal scratch']
  #allocation2 [shape = 'f32[1,1]{1,0:T(1,128)S(1)}', space=vmem, size = 0x200, scoped, tag = 'scoped memory for tpu_custom_call.1']
  %s0 = inlined_call_operand.vmem [shape: f32[2,4,32], index: 0, kind: input, shape index: {}]
  %s1 = inlined_call_operand.vmem [shape: f32[32,88], index: 1, kind: input, shape index: {}]
  %s2 = inlined_call_operand.vmem [shape: f32[88,64], index: 2, kind: input, shape index: {}]
  %s3 = inlined_call_operand.vmem [shape: f32[64,64], index: 3, kind: input, shape index: {}]
  %s4 = inlined_call_operand.vmem [shape: f32[64,32], index: 4, kind: input, shape index: {}]
  %s5 = inlined_call_operand.vmem [shape: f32[32,32], index: 5, kind: input, shape index: {}]
  %s6 = inlined_call_operand.vmem [shape: f32[32,1], index: 6, kind: input, shape index: {}]
  %s7 = inlined_call_operand.vmem [shape: f32[1,88], index: 7, kind: input, shape index: {}]
  %s8 = inlined_call_operand.vmem [shape: f32[1,64], index: 8, kind: input, shape index: {}]
  %s9 = inlined_call_operand.vmem [shape: f32[1,64], index: 9, kind: input, shape index: {}]
  %s10 = inlined_call_operand.vmem [shape: f32[1,32], index: 10, kind: input, shape index: {}]
  %s11 = inlined_call_operand.vmem [shape: f32[1,32], index: 11, kind: input, shape index: {}]
  %s12 = inlined_call_operand.<no memory space> [shape: f32[1,1], index: 12, kind: input, shape index: {}]
  %s13 = inlined_call_operand.hbm [shape: f32[2,4,88], index: 13, kind: output, shape index: {0}]
  %s14 = inlined_call_operand.hbm [shape: f32[2,4,64], index: 14, kind: output, shape index: {1}]
  %s15 = inlined_call_operand.hbm [shape: f32[2,4,64], index: 15, kind: output, shape index: {2}]
  %s16 = inlined_call_operand.hbm [shape: f32[2,4,32], index: 16, kind: output, shape index: {3}]
  %s17 = inlined_call_operand.hbm [shape: f32[2,4,32], index: 17, kind: output, shape index: {4}]
  %s18 = inlined_call_operand.vmem [shape: f32[2,4,1], index: 18, kind: output, shape index: {5}]
  %19 = xla_tuple %s13, %s14, %s15, %s16, %s17, %s18
  %s20 = sld [smem:[#allocation0]]
  $region125: #{tpu_custom_call.1} parent=0
    _
  %s22 = ssub.s32 1, %s20
  %s23 = scalar_select 0, %s22, %s20
  %v24 = vstv %s12
  %25 = vst [vmem:[#allocation2] sm:$0x1] %v24
  $region1: #{tpu_custom_call.1} parent=0
    #allocation3 [shape = 'u8[4096]{0}', space=vmem, size = 0x1000, scoped, tag = 'output window, operand 0']
    #allocation4 [shape = 's32[2]{0}', space=sflag, size = 0x8, scoped, tag = 'scoped memory for tpu_custom_call.1']
    #allocation5 [shape = 'u8[4096]{0}', space=vmem, size = 0x1000, scoped, tag = 'output window, operand 1']
    #allocation6 [shape = 's32[2]{0}', space=sflag, size = 0x8, scoped, tag = 'scoped memory for tpu_custom_call.1']
    #allocation7 [shape = 'u8[4096]{0}', space=vmem, size = 0x1000, scoped, tag = 'output window, operand 2']
    #allocation8 [shape = 'u8[4096]{0}', space=vmem, size = 0x1000, scoped, tag = 'output window, operand 3']
    #allocation9 [shape = 's32[2]{0}', space=sflag, size = 0x8, scoped, tag = 'scoped memory for tpu_custom_call.1']
    #allocation10 [shape = 'u8[4096]{0}', space=vmem, size = 0x1000, scoped, tag = 'output window, operand 4']
    %26 = vsyncpa [#allocation4], 0
    %s27 = scalar_lea.sflag [#allocation4], 1
    %28 = vsyncpa %s27, 0
    %29 = vsyncpa [#allocation6], 0
    %s30 = scalar_lea.sflag [#allocation6], 1
    %31 = vsyncpa %s30, 0
    %32 = vsyncpa [#allocation9], 0
    %s33 = scalar_lea.sflag [#allocation9], 1
    %34 = vsyncpa %s33, 0
    loop: start=0, step=1, limit=4
    $region2: #{tpu_custom_call.1} parent=1 // loop_pre_header
      _
    $region3: #{tpu_custom_call.1} parent=1 // loop_header
      %s36 = sphi 0, %s40
      %p37 = scmp.ge.s32.totalorder %s36, 4
      %s46 = sphi 0, %s48
      %s49 = sphi 0, %s46
      %s50 = sphi 0, %s49
      %s66 = sphi 0, %s50
      %s70 = sphi 0, %s70
      %s72 = sphi 0, %s70
      %s73 = sphi 0, %s72
      %s87 = sphi 0, %s73
      %s91 = sphi 0, %s91
      %s93 = sphi 0, %s91
      %s94 = sphi 0, %s93
      %s108 = sphi 0, %s94
      %s112 = sphi 0, %s112
      %s114 = sphi 0, %s112
      %s115 = sphi 0, %s114
      %s129 = sphi 0, %s115
      %s133 = sphi 0, %s133
      %s135 = sphi 0, %s133
      %s136 = sphi 0, %s135
      %s150 = sphi 0, %s136
      %s154 = sphi 0, %s154
      %s156 = sphi 0, %s154
      %s157 = sphi 0, %s156
      %s171 = sphi 0, %s157
      %s175 = sphi 0, %s175
      %s177 = sphi 0, %s175
      %s178 = sphi 0, %s177
      %s192 = sphi 0, %s178
      %s196 = sphi 0, %s196
      %s198 = sphi 0, %s196
      %s199 = sphi 0, %s198
      %s213 = sphi 0, %s199
      %s217 = sphi 0, %s217
      %s219 = sphi 0, %s217
      %s220 = sphi 0, %s219
      %s234 = sphi 0, %s220
      %s238 = sphi 0, %s238
      %s240 = sphi 0, %s238
      %s241 = sphi 0, %s240
      %s255 = sphi 0, %s241
      %s259 = sphi 0, %s259
      %s261 = sphi 0, %s259
      %s262 = sphi 0, %s261
      %s276 = sphi 0, %s262
      %s280 = sphi 0, %s280
      %s282 = sphi 0, %s280
      %s283 = sphi 0, %s282
      %s297 = sphi 0, %s283
      %s301 = sphi 0, %s301
      %s303 = sphi 0, %s301
      %s304 = sphi 0, %s303
      %s318 = sphi 0, %s304
      %s324 = sphi 0, %s326
      %s327 = sphi 0, %s324
      %s328 = sphi 0, %s327
      %s344 = sphi 0, %s328
      %s350 = sphi 0, %s352
      %s353 = sphi 0, %s350
      %s354 = sphi 0, %s353
      %s370 = sphi 0, %s354
      %s376 = sphi 0, %s378
      %s379 = sphi 0, %s376
      %s380 = sphi 0, %s379
      %s396 = sphi 0, %s380
      %s402 = sphi 0, %s404
      %s405 = sphi 0, %s402
      %s406 = sphi 0, %s405
      %s422 = sphi 0, %s406
      %s428 = sphi 0, %s430
      %s431 = sphi 0, %s428
      %s432 = sphi 0, %s431
      %s448 = sphi 0, %s432
      %s454 = sphi 0, %s456
      %s457 = sphi 0, %s454
      %s458 = sphi 0, %s457
      %s474 = sphi 0, %s458
    $region4: #{tpu_custom_call.1} parent=1 // loop_header_branch
      %39 = sbr.rel (%p37) target = $region8
    $region5: #{tpu_custom_call.1} parent=1 // loop_body
      %s41 = ssub.s32 %s36, 1
      %s42 = ssub.s32 %s36, 2
      %s43 = sadd.s32 %s36, 1
      %s44 = ssub.s32 %s36, %s43
      %p45 = scmp.eq.s32.totalorder %s44, 0
      %s47 = sadd.s32 %s46, 1
      %s48 = scalar_select %p45, %s46, %s47
      %p51 = pneg %p45
      %p52 = scmp.eq.s32.totalorder %s36, 1
      %p53 = por %p51, %p52
      %p54 = scmp.ne.s32.totalorder %s46, %s49
      %p55 = scmp.eq.s32.totalorder %s36, 0
      %p56 = por %p54, %p55
      %p57 = scmp.ne.s32.totalorder %s46, %s49
      %p58 = scmp.eq.s32.totalorder %s41, 1
      %p59 = por %p57, %p58
      %p60 = scmp.ne.s32.totalorder %s49, %s50
      %p61 = scmp.eq.s32.totalorder %s41, 0
      %p62 = por %p60, %p61
      %p63 = scmp.ne.s32.totalorder %s49, %s50
      %p64 = scmp.eq.s32.totalorder %s42, 1
      %p65 = por %p63, %p64
      %p67 = scmp.ne.s32.totalorder %s50, %s66
      %p68 = scmp.eq.s32.totalorder %s42, 0
      %p69 = por %p67, %p68
      %s71 = sadd.s32 %s70, 1
      %p74 = scmp.eq.s32.totalorder %s36, 1
      %p75 = scmp.ne.s32.totalorder %s70, %s72
      %p76 = scmp.eq.s32.totalorder %s36, 0
      %p77 = por %p75, %p76
      %p78 = scmp.ne.s32.totalorder %s70, %s72
      %p79 = scmp.eq.s32.totalorder %s41, 1
      %p80 = por %p78, %p79
      %p81 = scmp.ne.s32.totalorder %s72, %s73
      %p82 = scmp.eq.s32.totalorder %s41, 0
      %p83 = por %p81, %p82
      %p84 = scmp.ne.s32.totalorder %s72, %s73
      %p85 = scmp.eq.s32.totalorder %s42, 1
      %p86 = por %p84, %p85
      %p88 = scmp.ne.s32.totalorder %s73, %s87
      %p89 = scmp.eq.s32.totalorder %s42, 0
      %p90 = por %p88, %p89
      %s92 = sadd.s32 %s91, 1
      %p95 = scmp.eq.s32.totalorder %s36, 1
      %p96 = scmp.ne.s32.totalorder %s91, %s93
      %p97 = scmp.eq.s32.totalorder %s36, 0
      %p98 = por %p96, %p97
      %p99 = scmp.ne.s32.totalorder %s91, %s93
      %p100 = scmp.eq.s32.totalorder %s41, 1
      %p101 = por %p99, %p100
      %p102 = scmp.ne.s32.totalorder %s93, %s94
      %p103 = scmp.eq.s32.totalorder %s41, 0
      %p104 = por %p102, %p103
      %p105 = scmp.ne.s32.totalorder %s93, %s94
      %p106 = scmp.eq.s32.totalorder %s42, 1
      %p107 = por %p105, %p106
      %p109 = scmp.ne.s32.totalorder %s94, %s108
      %p110 = scmp.eq.s32.totalorder %s42, 0
      %p111 = por %p109, %p110
      %s113 = sadd.s32 %s112, 1
      %p116 = scmp.eq.s32.totalorder %s36, 1
      %p117 = scmp.ne.s32.totalorder %s112, %s114
      %p118 = scmp.eq.s32.totalorder %s36, 0
      %p119 = por %p117, %p118
      %p120 = scmp.ne.s32.totalorder %s112, %s114
      %p121 = scmp.eq.s32.totalorder %s41, 1
      %p122 = por %p120, %p121
      %p123 = scmp.ne.s32.totalorder %s114, %s115
      %p124 = scmp.eq.s32.totalorder %s41, 0
      %p125 = por %p123, %p124
      %p126 = scmp.ne.s32.totalorder %s114, %s115
      %p127 = scmp.eq.s32.totalorder %s42, 1
      %p128 = por %p126, %p127
      %p130 = scmp.ne.s32.totalorder %s115, %s129
      %p131 = scmp.eq.s32.totalorder %s42, 0
      %p132 = por %p130, %p131
      %s134 = sadd.s32 %s133, 1
      %p137 = scmp.eq.s32.totalorder %s36, 1
      %p138 = scmp.ne.s32.totalorder %s133, %s135
      %p139 = scmp.eq.s32.totalorder %s36, 0
      %p140 = por %p138, %p139
      %p141 = scmp.ne.s32.totalorder %s133, %s135
      %p142 = scmp.eq.s32.totalorder %s41, 1
      %p143 = por %p141, %p142
      %p144 = scmp.ne.s32.totalorder %s135, %s136
      %p145 = scmp.eq.s32.totalorder %s41, 0
      %p146 = por %p144, %p145
      %p147 = scmp.ne.s32.totalorder %s135, %s136
      %p148 = scmp.eq.s32.totalorder %s42, 1
      %p149 = por %p147, %p148
      %p151 = scmp.ne.s32.totalorder %s136, %s150
      %p152 = scmp.eq.s32.totalorder %s42, 0
      %p153 = por %p151, %p152
      %s155 = sadd.s32 %s154, 1
      %p158 = scmp.eq.s32.totalorder %s36, 1
      %p159 = scmp.ne.s32.totalorder %s154, %s156
      %p160 = scmp.eq.s32.totalorder %s36, 0
      %p161 = por %p159, %p160
      %p162 = scmp.ne.s32.totalorder %s154, %s156
      %p163 = scmp.eq.s32.totalorder %s41, 1
      %p164 = por %p162, %p163
      %p165 = scmp.ne.s32.totalorder %s156, %s157
      %p166 = scmp.eq.s32.totalorder %s41, 0
      %p167 = por %p165, %p166
      %p168 = scmp.ne.s32.totalorder %s156, %s157
      %p169 = scmp.eq.s32.totalorder %s42, 1
      %p170 = por %p168, %p169
      %p172 = scmp.ne.s32.totalorder %s157, %s171
      %p173 = scmp.eq.s32.totalorder %s42, 0
      %p174 = por %p172, %p173
      %s176 = sadd.s32 %s175, 1
      %p179 = scmp.eq.s32.totalorder %s36, 1
      %p180 = scmp.ne.s32.totalorder %s175, %s177
      %p181 = scmp.eq.s32.totalorder %s36, 0
      %p182 = por %p180, %p181
      %p183 = scmp.ne.s32.totalorder %s175, %s177
      %p184 = scmp.eq.s32.totalorder %s41, 1
      %p185 = por %p183, %p184
      %p186 = scmp.ne.s32.totalorder %s177, %s178
      %p187 = scmp.eq.s32.totalorder %s41, 0
      %p188 = por %p186, %p187
      %p189 = scmp.ne.s32.totalorder %s177, %s178
      %p190 = scmp.eq.s32.totalorder %s42, 1
      %p191 = por %p189, %p190
      %p193 = scmp.ne.s32.totalorder %s178, %s192
      %p194 = scmp.eq.s32.totalorder %s42, 0
      %p195 = por %p193, %p194
      %s197 = sadd.s32 %s196, 1
      %p200 = scmp.eq.s32.totalorder %s36, 1
      %p201 = scmp.ne.s32.totalorder %s196, %s198
      %p202 = scmp.eq.s32.totalorder %s36, 0
      %p203 = por %p201, %p202
      %p204 = scmp.ne.s32.totalorder %s196, %s198
      %p205 = scmp.eq.s32.totalorder %s41, 1
      %p206 = por %p204, %p205
      %p207 = scmp.ne.s32.totalorder %s198, %s199
      %p208 = scmp.eq.s32.totalorder %s41, 0
      %p209 = por %p207, %p208
      %p210 = scmp.ne.s32.totalorder %s198, %s199
      %p211 = scmp.eq.s32.totalorder %s42, 1
      %p212 = por %p210, %p211
      %p214 = scmp.ne.s32.totalorder %s199, %s213
      %p215 = scmp.eq.s32.totalorder %s42, 0
      %p216 = por %p214, %p215
      %s218 = sadd.s32 %s217, 1
      %p221 = scmp.eq.s32.totalorder %s36, 1
      %p222 = scmp.ne.s32.totalorder %s217, %s219
      %p223 = scmp.eq.s32.totalorder %s36, 0
      %p224 = por %p222, %p223
      %p225 = scmp.ne.s32.totalorder %s217, %s219
      %p226 = scmp.eq.s32.totalorder %s41, 1
      %p227 = por %p225, %p226
      %p228 = scmp.ne.s32.totalorder %s219, %s220
      %p229 = scmp.eq.s32.totalorder %s41, 0
      %p230 = por %p228, %p229
      %p231 = scmp.ne.s32.totalorder %s219, %s220
      %p232 = scmp.eq.s32.totalorder %s42, 1
      %p233 = por %p231, %p232
      %p235 = scmp.ne.s32.totalorder %s220, %s234
      %p236 = scmp.eq.s32.totalorder %s42, 0
      %p237 = por %p235, %p236
      %s239 = sadd.s32 %s238, 1
      %p242 = scmp.eq.s32.totalorder %s36, 1
      %p243 = scmp.ne.s32.totalorder %s238, %s240
      %p244 = scmp.eq.s32.totalorder %s36, 0
      %p245 = por %p243, %p244
      %p246 = scmp.ne.s32.totalorder %s238, %s240
      %p247 = scmp.eq.s32.totalorder %s41, 1
      %p248 = por %p246, %p247
      %p249 = scmp.ne.s32.totalorder %s240, %s241
      %p250 = scmp.eq.s32.totalorder %s41, 0
      %p251 = por %p249, %p250
      %p252 = scmp.ne.s32.totalorder %s240, %s241
      %p253 = scmp.eq.s32.totalorder %s42, 1
      %p254 = por %p252, %p253
      %p256 = scmp.ne.s32.totalorder %s241, %s255
      %p257 = scmp.eq.s32.totalorder %s42, 0
      %p258 = por %p256, %p257
      %s260 = sadd.s32 %s259, 1
      %p263 = scmp.eq.s32.totalorder %s36, 1
      %p264 = scmp.ne.s32.totalorder %s259, %s261
      %p265 = scmp.eq.s32.totalorder %s36, 0
      %p266 = por %p264, %p265
      %p267 = scmp.ne.s32.totalorder %s259, %s261
      %p268 = scmp.eq.s32.totalorder %s41, 1
      %p269 = por %p267, %p268
      %p270 = scmp.ne.s32.totalorder %s261, %s262
      %p271 = scmp.eq.s32.totalorder %s41, 0
      %p272 = por %p270, %p271
      %p273 = scmp.ne.s32.totalorder %s261, %s262
      %p274 = scmp.eq.s32.totalorder %s42, 1
      %p275 = por %p273, %p274
      %p277 = scmp.ne.s32.totalorder %s262, %s276
      %p278 = scmp.eq.s32.totalorder %s42, 0
      %p279 = por %p277, %p278
      %s281 = sadd.s32 %s280, 1
      %p284 = scmp.eq.s32.totalorder %s36, 1
      %p285 = scmp.ne.s32.totalorder %s280, %s282
      %p286 = scmp.eq.s32.totalorder %s36, 0
      %p287 = por %p285, %p286
      %p288 = scmp.ne.s32.totalorder %s280, %s282
      %p289 = scmp.eq.s32.totalorder %s41, 1
      %p290 = por %p288, %p289
      %p291 = scmp.ne.s32.totalorder %s282, %s283
      %p292 = scmp.eq.s32.totalorder %s41, 0
      %p293 = por %p291, %p292
      %p294 = scmp.ne.s32.totalorder %s282, %s283
      %p295 = scmp.eq.s32.totalorder %s42, 1
      %p296 = por %p294, %p295
      %p298 = scmp.ne.s32.totalorder %s283, %s297
      %p299 = scmp.eq.s32.totalorder %s42, 0
      %p300 = por %p298, %p299
      %s302 = sadd.s32 %s301, 1
      %p305 = scmp.eq.s32.totalorder %s36, 1
      %p306 = scmp.ne.s32.totalorder %s301, %s303
      %p307 = scmp.eq.s32.totalorder %s36, 0
      %p308 = por %p306, %p307
      %p309 = scmp.ne.s32.totalorder %s301, %s303
      %p310 = scmp.eq.s32.totalorder %s41, 1
      %p311 = por %p309, %p310
      %p312 = scmp.ne.s32.totalorder %s303, %s304
      %p313 = scmp.eq.s32.totalorder %s41, 0
      %p314 = por %p312, %p313
      %p315 = scmp.ne.s32.totalorder %s303, %s304
      %p316 = scmp.eq.s32.totalorder %s42, 1
      %p317 = por %p315, %p316
      %p319 = scmp.ne.s32.totalorder %s304, %s318
      %p320 = scmp.eq.s32.totalorder %s42, 0
      %p321 = por %p319, %p320
      %s322 = ssub.s32 %s36, %s43
      %p323 = scmp.eq.s32.totalorder %s322, 0
      %s325 = sadd.s32 %s324, 1
      %s326 = scalar_select %p323, %s324, %s325
      %p329 = pneg %p323
      %p330 = scmp.eq.s32.totalorder %s36, 1
      %p331 = por %p329, %p330
      %p332 = scmp.ne.s32.totalorder %s324, %s327
      %p333 = scmp.eq.s32.totalorder %s36, 0
      %p334 = por %p332, %p333
      %p335 = scmp.ne.s32.totalorder %s324, %s327
      %p336 = scmp.eq.s32.totalorder %s41, 1
      %p337 = por %p335, %p336
      %p338 = scmp.ne.s32.totalorder %s327, %s328
      %p339 = scmp.eq.s32.totalorder %s41, 0
      %p340 = por %p338, %p339
      %p341 = scmp.ne.s32.totalorder %s327, %s328
      %p342 = scmp.eq.s32.totalorder %s42, 1
      %p343 = por %p341, %p342
      %p345 = scmp.ne.s32.totalorder %s328, %s344
      %p346 = scmp.eq.s32.totalorder %s42, 0
      %p347 = por %p345, %p346
      %s348 = ssub.s32 %s36, %s43
      %p349 = scmp.eq.s32.totalorder %s348, 0
      %s351 = sadd.s32 %s350, 1
      %s352 = scalar_select %p349, %s350, %s351
      %p355 = pneg %p349
      %p356 = scmp.eq.s32.totalorder %s36, 1
      %p357 = por %p355, %p356
      %p358 = scmp.ne.s32.totalorder %s350, %s353
      %p359 = scmp.eq.s32.totalorder %s36, 0
      %p360 = por %p358, %p359
      %p361 = scmp.ne.s32.totalorder %s350, %s353
      %p362 = scmp.eq.s32.totalorder %s41, 1
      %p363 = por %p361, %p362
      %p364 = scmp.ne.s32.totalorder %s353, %s354
      %p365 = scmp.eq.s32.totalorder %s41, 0
      %p366 = por %p364, %p365
      %p367 = scmp.ne.s32.totalorder %s353, %s354
      %p368 = scmp.eq.s32.totalorder %s42, 1
      %p369 = por %p367, %p368
      %p371 = scmp.ne.s32.totalorder %s354, %s370
      %p372 = scmp.eq.s32.totalorder %s42, 0
      %p373 = por %p371, %p372
      %s374 = ssub.s32 %s36, %s43
      %p375 = scmp.eq.s32.totalorder %s374, 0
      %s377 = sadd.s32 %s376, 1
      %s378 = scalar_select %p375, %s376, %s377
      %p381 = pneg %p375
      %p382 = scmp.eq.s32.totalorder %s36, 1
      %p383 = por %p381, %p382
      %p384 = scmp.ne.s32.totalorder %s376, %s379
      %p385 = scmp.eq.s32.totalorder %s36, 0
      %p386 = por %p384, %p385
      %p387 = scmp.ne.s32.totalorder %s376, %s379
      %p388 = scmp.eq.s32.totalorder %s41, 1
      %p389 = por %p387, %p388
      %p390 = scmp.ne.s32.totalorder %s379, %s380
      %p391 = scmp.eq.s32.totalorder %s41, 0
      %p392 = por %p390, %p391
      %p393 = scmp.ne.s32.totalorder %s379, %s380
      %p394 = scmp.eq.s32.totalorder %s42, 1
      %p395 = por %p393, %p394
      %p397 = scmp.ne.s32.totalorder %s380, %s396
      %p398 = scmp.eq.s32.totalorder %s42, 0
      %p399 = por %p397, %p398
      %s400 = ssub.s32 %s36, %s43
      %p401 = scmp.eq.s32.totalorder %s400, 0
      %s403 = sadd.s32 %s402, 1
      %s404 = scalar_select %p401, %s402, %s403
      %p407 = pneg %p401
      %p408 = scmp.eq.s32.totalorder %s36, 1
      %p409 = por %p407, %p408
      %p410 = scmp.ne.s32.totalorder %s402, %s405
      %p411 = scmp.eq.s32.totalorder %s36, 0
      %p412 = por %p410, %p411
      %p413 = scmp.ne.s32.totalorder %s402, %s405
      %p414 = scmp.eq.s32.totalorder %s41, 1
      %p415 = por %p413, %p414
      %p416 = scmp.ne.s32.totalorder %s405, %s406
      %p417 = scmp.eq.s32.totalorder %s41, 0
      %p418 = por %p416, %p417
      %p419 = scmp.ne.s32.totalorder %s405, %s406
      %p420 = scmp.eq.s32.totalorder %s42, 1
      %p421 = por %p419, %p420
      %p423 = scmp.ne.s32.totalorder %s406, %s422
      %p424 = scmp.eq.s32.totalorder %s42, 0
      %p425 = por %p423, %p424
      %s426 = ssub.s32 %s36, %s43
      %p427 = scmp.eq.s32.totalorder %s426, 0
      %s429 = sadd.s32 %s428, 1
      %s430 = scalar_select %p427, %s428, %s429
      %p433 = pneg %p427
      %p434 = scmp.eq.s32.totalorder %s36, 1
      %p435 = por %p433, %p434
      %p436 = scmp.ne.s32.totalorder %s428, %s431
      %p437 = scmp.eq.s32.totalorder %s36, 0
      %p438 = por %p436, %p437
      %p439 = scmp.ne.s32.totalorder %s428, %s431
      %p440 = scmp.eq.s32.totalorder %s41, 1
      %p441 = por %p439, %p440
      %p442 = scmp.ne.s32.totalorder %s431, %s432
      %p443 = scmp.eq.s32.totalorder %s41, 0
      %p444 = por %p442, %p443
      %p445 = scmp.ne.s32.totalorder %s431, %s432
      %p446 = scmp.eq.s32.totalorder %s42, 1
      %p447 = por %p445, %p446
      %p449 = scmp.ne.s32.totalorder %s432, %s448
      %p450 = scmp.eq.s32.totalorder %s42, 0
      %p451 = por %p449, %p450
      %s452 = ssub.s32 %s36, %s43
      %p453 = scmp.eq.s32.totalorder %s452, 0
      %s455 = sadd.s32 %s454, 1
      %s456 = scalar_select %p453, %s454, %s455
      %p459 = pneg %p453
      %p460 = scmp.eq.s32.totalorder %s36, 1
      %p461 = por %p459, %p460
      %p462 = scmp.ne.s32.totalorder %s454, %s457
      %p463 = scmp.eq.s32.totalorder %s36, 0
      %p464 = por %p462, %p463
      %p465 = scmp.ne.s32.totalorder %s454, %s457
      %p466 = scmp.eq.s32.totalorder %s41, 1
      %p467 = por %p465, %p466
      %p468 = scmp.ne.s32.totalorder %s457, %s458
      %p469 = scmp.eq.s32.totalorder %s41, 0
      %p470 = por %p468, %p469
      %p471 = scmp.ne.s32.totalorder %s457, %s458
      %p472 = scmp.eq.s32.totalorder %s42, 1
      %p473 = por %p471, %p472
      %p475 = scmp.ne.s32.totalorder %s458, %s474
      %p476 = scmp.eq.s32.totalorder %s42, 0
      %p477 = por %p475, %p476
      %p478 = scmp.le.s32.totalorder 1, %s36
      %p479 = scmp.lt.s32.totalorder %s36, 3
      %p480 = pnand %p478, %p479
      %p481 = pneg %p480
      // Predicated region
      $region9: #{tpu_custom_call.1} parent=5 // pred_check
        _
      $region10: #{tpu_custom_call.1} parent=5 // pred_check_branch
        %483 = sbr.rel (%p480) target = $region12
      $region11: #{tpu_custom_call.1} parent=5 // pred_region
        %s484 = ssub.s32 %s36, 1
        // Predicated region
        $region13: #{tpu_custom_call.1} parent=11 // pred_check
          %p485 = pneg %p83
        $region14: #{tpu_custom_call.1} parent=11 // pred_check_branch
          %487 = sbr.rel (%p485) target = $region16
        $region15: #{tpu_custom_call.1} parent=11 // pred_region
          _
        $region16: #{tpu_custom_call.1} parent=11 // pred_fallthru
          _
        // Predicated region
        $region17: #{tpu_custom_call.1} parent=11 // pred_check
          %p488 = pneg %p104
        $region18: #{tpu_custom_call.1} parent=11 // pred_check_branch
          %490 = sbr.rel (%p488) target = $region20
        $region19: #{tpu_custom_call.1} parent=11 // pred_region
          _
        $region20: #{tpu_custom_call.1} parent=11 // pred_fallthru
          _
        // Predicated region
        $region21: #{tpu_custom_call.1} parent=11 // pred_check
          %p491 = pneg %p125
        $region22: #{tpu_custom_call.1} parent=11 // pred_check_branch
          %493 = sbr.rel (%p491) target = $region24
        $region23: #{tpu_custom_call.1} parent=11 // pred_region
          _
        $region24: #{tpu_custom_call.1} parent=11 // pred_fallthru
          _
        // Predicated region
        $region25: #{tpu_custom_call.1} parent=11 // pred_check
          %p494 = pneg %p146
        $region26: #{tpu_custom_call.1} parent=11 // pred_check_branch
          %496 = sbr.rel (%p494) target = $region28
        $region27: #{tpu_custom_call.1} parent=11 // pred_region
          _
        $region28: #{tpu_custom_call.1} parent=11 // pred_fallthru
          _
        // Predicated region
        $region29: #{tpu_custom_call.1} parent=11 // pred_check
          %p497 = pneg %p167
        $region30: #{tpu_custom_call.1} parent=11 // pred_check_branch
          %499 = sbr.rel (%p497) target = $region32
        $region31: #{tpu_custom_call.1} parent=11 // pred_region
          _
        $region32: #{tpu_custom_call.1} parent=11 // pred_fallthru
          _
        // Predicated region
        $region33: #{tpu_custom_call.1} parent=11 // pred_check
          %p500 = pneg %p188
        $region34: #{tpu_custom_call.1} parent=11 // pred_check_branch
          %502 = sbr.rel (%p500) target = $region36
        $region35: #{tpu_custom_call.1} parent=11 // pred_region
          _
        $region36: #{tpu_custom_call.1} parent=11 // pred_fallthru
          _
        // Predicated region
        $region37: #{tpu_custom_call.1} parent=11 // pred_check
          %p503 = pneg %p209
        $region38: #{tpu_custom_call.1} parent=11 // pred_check_branch
          %505 = sbr.rel (%p503) target = $region40
        $region39: #{tpu_custom_call.1} parent=11 // pred_region
          _
        $region40: #{tpu_custom_call.1} parent=11 // pred_fallthru
          _
        // Predicated region
        $region41: #{tpu_custom_call.1} parent=11 // pred_check
          %p506 = pneg %p230
        $region42: #{tpu_custom_call.1} parent=11 // pred_check_branch
          %508 = sbr.rel (%p506) target = $region44
        $region43: #{tpu_custom_call.1} parent=11 // pred_region
          _
        $region44: #{tpu_custom_call.1} parent=11 // pred_fallthru
          _
        // Predicated region
        $region45: #{tpu_custom_call.1} parent=11 // pred_check
          %p509 = pneg %p251
        $region46: #{tpu_custom_call.1} parent=11 // pred_check_branch
          %511 = sbr.rel (%p509) target = $region48
        $region47: #{tpu_custom_call.1} parent=11 // pred_region
          _
        $region48: #{tpu_custom_call.1} parent=11 // pred_fallthru
          _
        // Predicated region
        $region49: #{tpu_custom_call.1} parent=11 // pred_check
          %p512 = pneg %p272
        $region50: #{tpu_custom_call.1} parent=11 // pred_check_branch
          %514 = sbr.rel (%p512) target = $region52
        $region51: #{tpu_custom_call.1} parent=11 // pred_region
          _
        $region52: #{tpu_custom_call.1} parent=11 // pred_fallthru
          _
        // Predicated region
        $region53: #{tpu_custom_call.1} parent=11 // pred_check
          %p515 = pneg %p293
        $region54: #{tpu_custom_call.1} parent=11 // pred_check_branch
          %517 = sbr.rel (%p515) target = $region56
        $region55: #{tpu_custom_call.1} parent=11 // pred_region
          _
        $region56: #{tpu_custom_call.1} parent=11 // pred_fallthru
          _
        // Predicated region
        $region57: #{tpu_custom_call.1} parent=11 // pred_check
          %p518 = pneg %p314
        $region58: #{tpu_custom_call.1} parent=11 // pred_check_branch
          %520 = sbr.rel (%p518) target = $region60
        $region59: #{tpu_custom_call.1} parent=11 // pred_region
          _
        $region60: #{tpu_custom_call.1} parent=11 // pred_fallthru
          _
      $region12: #{tpu_custom_call.1} parent=5 // pred_fallthru
        _
      %p521 = scmp.lt.s32.totalorder %s36, 2
      // Predicated region
      $region61: #{tpu_custom_call.1} parent=5 // pred_check
        %p522 = pneg %p521
      $region62: #{tpu_custom_call.1} parent=5 // pred_check_branch
        %524 = sbr.rel (%p522) target = $region64
      $region63: #{tpu_custom_call.1} parent=5 // pred_region
        // Predicated region
        $region65: #{tpu_custom_call.1} parent=63 // pred_check
          %p525 = pneg %p56
        $region66: #{tpu_custom_call.1} parent=63 // pred_check_branch
          %527 = sbr.rel (%p525) target = $region68
        $region67: #{tpu_custom_call.1} parent=63 // pred_region
          %p528 = scmp.lt.s32.totalorder %s36, 1
          %s529 = scalar_select %p528, %s36, 1
          %s530 = smul.addr %s529, 4
          %s531 = scalar_lea.vmem %s0, %s530
        $region68: #{tpu_custom_call.1} parent=63 // pred_fallthru
          _
      $region64: #{tpu_custom_call.1} parent=5 // pred_fallthru
        _
      %p532 = scmp.le.s32.totalorder 1, %s36
      %p533 = scmp.lt.s32.totalorder %s36, 3
      %p534 = pnand %p532, %p533
      %p535 = pneg %p534
      // Predicated region
      $region69: #{tpu_custom_call.1} parent=5 // pred_check
        _
      $region70: #{tpu_custom_call.1} parent=5 // pred_check_branch
        %537 = sbr.rel (%p534) target = $region72
      $region71: #{tpu_custom_call.1} parent=5 // pred_region
        %s538 = ssub.s32 %s36, 1
        %p539 = scmp.lt.s32.totalorder %s41, 1
        %s540 = scalar_select %p539, %s41, 1
        %s541 = smul.addr %s540, 4
        %s542 = scalar_lea.vmem %s0, %s541
        %p543 = pneg %p62
        %p544 = pneg %p59
        %p545 = pneg %p83
        %p546 = pneg %p80
        %p547 = pneg %p104
        %p548 = pneg %p101
        %p549 = pneg %p125
        %p550 = pneg %p122
        %p551 = pneg %p146
        %p552 = pneg %p143
        %p553 = pneg %p167
        %p554 = pneg %p164
        %p555 = pneg %p188
        %p556 = pneg %p185
        %p557 = pneg %p209
        %p558 = pneg %p206
        %p559 = pneg %p230
        %p560 = pneg %p227
        %p561 = pneg %p251
        %p562 = pneg %p248
        %p563 = pneg %p272
        %p564 = pneg %p269
        %p565 = pneg %p293
        %p566 = pneg %p290
        %p567 = pneg %p314
        %p568 = pneg %p311
        %p569 = pneg %p340
        %p570 = pneg %p337
        %s571 = sand.u32 %s327, 1
        %s572 = scalar_lea.sflag [#allocation4], %s571
        %s573 = sand.u32 %s327, 1
        %s574 = smul.addr %s573, 4
        %s575 = scalar_lea.vmem [#allocation3], %s574
        %p576 = pneg %p366
        %p577 = pneg %p363
        %s578 = sand.u32 %s41, 1
        %s579 = scalar_lea.sflag [#allocation6], %s578
        %s580 = sand.u32 %s353, 1
        %s581 = smul.addr %s580, 4
        %s582 = scalar_lea.vmem [#allocation5], %s581
        %p583 = pneg %p392
        %p584 = pneg %p389
        %s585 = sand.u32 %s41, 1
        %s586 = scalar_lea.sflag [#allocation6], %s585
        %s587 = sand.u32 %s379, 1
        %s588 = smul.addr %s587, 4
        %s589 = scalar_lea.vmem [#allocation7], %s588
        %p590 = pneg %p418
        %p591 = pneg %p415
        %s592 = sand.u32 %s41, 1
        %s593 = scalar_lea.sflag [#allocation9], %s592
        %s594 = sand.u32 %s405, 1
        %s595 = smul.addr %s594, 4
        %s596 = scalar_lea.vmem [#allocation8], %s595
        %p597 = pneg %p444
        %p598 = pneg %p441
        %s599 = sand.u32 %s41, 1
        %s600 = scalar_lea.sflag [#allocation9], %s599
        %s601 = sand.u32 %s431, 1
        %s602 = smul.addr %s601, 4
        %s603 = scalar_lea.vmem [#allocation10], %s602
        %p604 = pneg %p470
        %p605 = pneg %p467
        %p606 = scmp.lt.s32.totalorder %s41, 1
        %s607 = scalar_select %p606, %s41, 1
        %s608 = smul.addr %s607, 4
        %s609 = scalar_lea.vmem %s18, %s608
        %p610 = scmp.lt.s32.totalorder %s41, 1
        %s611 = scalar_select %p610, %s41, 1
        %s612 = smul.addr %s611, 4
        %s613 = scalar_lea.vmem %s0, %s612
        %p614 = scmp.lt.s32.totalorder %s41, 1
        %s615 = scalar_select %p614, %s41, 1
        %s616 = smul.addr %s615, 4
        %s617 = scalar_lea.vmem %s18, %s616
        %v618 = vld [vmem:[%s613] sm:$0xf]
        %v619 = vld [vmem:[%s1] sm:$0xff]
        %v620 = vld [vmem:[%s1 + $0x8] sm:$0xff]
        %v621 = vld [vmem:[%s1 + $0x10] sm:$0xff]
        %v622 = vld [vmem:[%s1 + $0x18] sm:$0xff]
        %v623 = vld [vmem:[%s7] sm:$0x1]
        %v625 = vlaneseq
        %v626 = vshrl.u32 %v625, 7
        %v627 = vsub.s32 0, %v626
        %v628 = vrot.slane %v623, %v627
        %vm630 = vcmask 261120
        %v632 = vsel %vm630, %v618, 0
        %634 = vmatprep.subr.mxu0 0.0
        %635 = vmatpush1.msra.mxu0 0.0
        %636 = vmatprep.subr.mxu0 0.0
        %637 = vmatpush1.msra.mxu0 0.0
        %638 = vmatprep.subr.mxu0 0.0
        %639 = vmatpush1.msra.mxu0 0.0
        %640 = vmatprep.subr.mxu0 0.0
        %641 = vmatpush1.msra.mxu0 0.0
        %642 = vmatprep.subr.mxu0 0.0
        %643 = vmatpush1.msra.mxu0 0.0
        %644 = vmatprep.subr.mxu0 0.0
        %645 = vmatpush1.msra.mxu0 0.0
        %646 = vmatprep.subr.mxu0 0.0
        %647 = vmatpush1.msra.mxu0 0.0
        %648 = vmatprep.subr.mxu0 0.0
        %649 = vmatpush1.msra.mxu0 0.0
        %650 = vmatprep.subr.mxu0 0.0
        %651 = vmatpush1.msra.mxu0 0.0
        %652 = vmatprep.subr.mxu0 0.0
        %653 = vmatpush1.msra.mxu0 0.0
        %654 = vmatprep.subr.mxu0 0.0
        %655 = vmatpush1.msra.mxu0 0.0
        %656 = vmatprep.subr.mxu0 0.0
        %657 = vmatpush1.msra.mxu0 0.0
        %658 = vmatprep.subr.mxu0 0.0
        %659 = vmatpush1.msra.mxu0 %v622
        %660 = vmatprep.subr.mxu0 0.0
        %661 = vmatpush1.msra.mxu0 %v621
        %662 = vmatprep.subr.mxu0 0.0
        %663 = vmatpush1.msra.mxu0 %v620
        %664 = vmatprep.subr.mxu0 0.0
        %665 = vmatpush1.msra.mxu0 %v619
        %666 = vmatprep.subr.mxu0 0.0
        %667 = vmatpush2.msra.mxu0 0.0
        %668 = vmatprep.subr.mxu0 0.0
        %669 = vmatpush2.msra.mxu0 0.0
        %670 = vmatprep.subr.mxu0 0.0
        %671 = vmatpush2.msra.mxu0 0.0
        %672 = vmatprep.subr.mxu0 0.0
        %673 = vmatpush2.msra.mxu0 0.0
        %674 = vmatprep.subr.mxu0 0.0
        %675 = vmatpush2.msra.mxu0 0.0
        %676 = vmatprep.subr.mxu0 0.0
        %677 = vmatpush2.msra.mxu0 0.0
        %678 = vmatprep.subr.mxu0 0.0
        %679 = vmatpush2.msra.mxu0 0.0
        %680 = vmatprep.subr.mxu0 0.0
        %681 = vmatpush2.msra.mxu0 0.0
        %682 = vmatprep.subr.mxu0 0.0
        %683 = vmatpush2.msra.mxu0 0.0
        %684 = vmatprep.subr.mxu0 0.0
        %685 = vmatpush2.msra.mxu0 0.0
        %686 = vmatprep.subr.mxu0 0.0
        %687 = vmatpush2.msra.mxu0 0.0
        %688 = vmatprep.subr.mxu0 0.0
        %689 = vmatpush2.msra.mxu0 0.0
        %690 = vmatprep.subr.mxu0 0.0
        %691 = vmatpush2.msra.mxu0 0.0
        %692 = vmatprep.subr.mxu0 0.0
        %693 = vmatpush2.msra.mxu0 0.0
        %694 = vmatprep.subr.mxu0 0.0
        %695 = vmatpush2.msra.mxu0 0.0
        %696 = vmatprep.subr.mxu0 0.0
        %697 = vmatpush2.msra.mxu0 0.0
        %698 = vmatprep.mubr.f32.mxu0 0.0
        %699 = vmatmul.mubr.f32.gmra.mxu0 %v632
        %v700 = vpop.f32.mrf.mxu0
        %v701 = vadd.f32 %v628, %v700
        %v702 = vpop.f32.mrf.mxu0
        %703 = vdwg.mxu0
        %vm704 = vcmp.gt.f32.partialorder %v701, 0.0
        %v705 = vmul.f32 %v701, 0.1
        %v706 = vsel %vm704, %v701, %v705
        %vm707 = vcmask 715776
        %708 = vst.msk [vmem:[%s575] sm:$0xf] %vm707, %v706
        %v709 = vld [vmem:[%s2] sm:$0xff]
        %v710 = vld [vmem:[%s2 + $0x8] sm:$0xff]
        %v711 = vld [vmem:[%s2 + $0x10] sm:$0xff]
        %v712 = vld [vmem:[%s2 + $0x18] sm:$0xff]
        %v713 = vld [vmem:[%s2 + $0x20] sm:$0xff]
        %v714 = vld [vmem:[%s2 + $0x28] sm:$0xff]
        %v715 = vld [vmem:[%s2 + $0x30] sm:$0xff]
        %v716 = vld [vmem:[%s2 + $0x38] sm:$0xff]
        %v717 = vld [vmem:[%s2 + $0x40] sm:$0xff]
        %v718 = vld [vmem:[%s2 + $0x48] sm:$0xff]
        %v719 = vld [vmem:[%s2 + $0x50] sm:$0xff]
        %v720 = vld [vmem:[%s8] sm:$0x1]
        %v722 = vlaneseq
        %v723 = vshrl.u32 %v722, 7
        %v724 = vsub.s32 0, %v723
        %v725 = vrot.slane %v720, %v724
        %vm727 = vcmask 719872
        %v729 = vsel %vm727, %v706, 0
        %731 = vmatprep.subr.mxu0 0.0
        %732 = vmatpush1.msra.mxu0 0.0
        %733 = vmatprep.subr.mxu0 0.0
        %734 = vmatpush1.msra.mxu0 0.0
        %735 = vmatprep.subr.mxu0 0.0
        %736 = vmatpush1.msra.mxu0 0.0
        %737 = vmatprep.subr.mxu0 0.0
        %738 = vmatpush1.msra.mxu0 0.0
        %739 = vmatprep.subr.mxu0 0.0
        %740 = vmatpush1.msra.mxu0 0.0
        %741 = vmatprep.subr.mxu0 0.0
        %742 = vmatpush1.msra.mxu0 %v719
        %743 = vmatprep.subr.mxu0 0.0
        %744 = vmatpush1.msra.mxu0 %v718
        %745 = vmatprep.subr.mxu0 0.0
        %746 = vmatpush1.msra.mxu0 %v717
        %747 = vmatprep.subr.mxu0 0.0
        %748 = vmatpush1.msra.mxu0 %v716
        %749 = vmatprep.subr.mxu0 0.0
        %750 = vmatpush1.msra.mxu0 %v715
        %751 = vmatprep.subr.mxu0 0.0
        %752 = vmatpush1.msra.mxu0 %v714
        %753 = vmatprep.subr.mxu0 0.0
        %754 = vmatpush1.msra.mxu0 %v713
        %755 = vmatprep.subr.mxu0 0.0
        %756 = vmatpush1.msra.mxu0 %v712
        %757 = vmatprep.subr.mxu0 0.0
        %758 = vmatpush1.msra.mxu0 %v711
        %759 = vmatprep.subr.mxu0 0.0
        %760 = vmatpush1.msra.mxu0 %v710
        %761 = vmatprep.subr.mxu0 0.0
        %762 = vmatpush1.msra.mxu0 %v709
        %763 = vmatprep.subr.mxu0 0.0
        %764 = vmatpush2.msra.mxu0 0.0
        %765 = vmatprep.subr.mxu0 0.0
        %766 = vmatpush2.msra.mxu0 0.0
        %767 = vmatprep.subr.mxu0 0.0
        %768 = vmatpush2.msra.mxu0 0.0
        %769 = vmatprep.subr.mxu0 0.0
        %770 = vmatpush2.msra.mxu0 0.0
        %771 = vmatprep.subr.mxu0 0.0
        %772 = vmatpush2.msra.mxu0 0.0
        %773 = vmatprep.subr.mxu0 0.0
        %774 = vmatpush2.msra.mxu0 0.0
        %775 = vmatprep.subr.mxu0 0.0
        %776 = vmatpush2.msra.mxu0 0.0
        %777 = vmatprep.subr.mxu0 0.0
        %778 = vmatpush2.msra.mxu0 0.0
        %779 = vmatprep.subr.mxu0 0.0
        %780 = vmatpush2.msra.mxu0 0.0
        %781 = vmatprep.subr.mxu0 0.0
        %782 = vmatpush2.msra.mxu0 0.0
        %783 = vmatprep.subr.mxu0 0.0
        %784 = vmatpush2.msra.mxu0 0.0
        %785 = vmatprep.subr.mxu0 0.0
        %786 = vmatpush2.msra.mxu0 0.0
        %787 = vmatprep.subr.mxu0 0.0
        %788 = vmatpush2.msra.mxu0 0.0
        %789 = vmatprep.subr.mxu0 0.0
        %790 = vmatpush2.msra.mxu0 0.0
        %791 = vmatprep.subr.mxu0 0.0
        %792 = vmatpush2.msra.mxu0 0.0
        %793 = vmatprep.subr.mxu0 0.0
        %794 = vmatpush2.msra.mxu0 0.0
        %795 = vmatprep.mubr.f32.mxu0 0.0
        %796 = vmatmul.mubr.f32.gmra.mxu0 %v729
        %v797 = vpop.f32.mrf.mxu0
        %v798 = vadd.f32 %v725, %v797
        %v799 = vpop.f32.mrf.mxu0
        %800 = vdwg.mxu0
        %vm801 = vcmp.gt.f32.partialorder %v798, 0.0
        %v802 = vmul.f32 %v798, 0.1
        %v803 = vsel %vm801, %v798, %v802
        %vm804 = vcmask 519168
        %805 = vst.msk [vmem:[%s582] sm:$0xf] %vm804, %v803
        %v806 = vld [vmem:[%s3] sm:$0xff]
        %v807 = vld [vmem:[%s3 + $0x8] sm:$0xff]
        %v808 = vld [vmem:[%s3 + $0x10] sm:$0xff]
        %v809 = vld [vmem:[%s3 + $0x18] sm:$0xff]
        %v810 = vld [vmem:[%s3 + $0x20] sm:$0xff]
        %v811 = vld [vmem:[%s3 + $0x28] sm:$0xff]
        %v812 = vld [vmem:[%s3 + $0x30] sm:$0xff]
        %v813 = vld [vmem:[%s3 + $0x38] sm:$0xff]
        %v814 = vld [vmem:[%s9] sm:$0x1]
        %v816 = vlaneseq
        %v817 = vshrl.u32 %v816, 7
        %v818 = vsub.s32 0, %v817
        %v819 = vrot.slane %v814, %v818
        %vm821 = vcmask 523264
        %v823 = vsel %vm821, %v803, 0
        %825 = vmatprep.subr.mxu0 0.0
        %826 = vmatpush1.msra.mxu0 0.0
        %827 = vmatprep.subr.mxu0 0.0
        %828 = vmatpush1.msra.mxu0 0.0
        %829 = vmatprep.subr.mxu0 0.0
        %830 = vmatpush1.msra.mxu0 0.0
        %831 = vmatprep.subr.mxu0 0.0
        %832 = vmatpush1.msra.mxu0 0.0
        %833 = vmatprep.subr.mxu0 0.0
        %834 = vmatpush1.msra.mxu0 0.0
        %835 = vmatprep.subr.mxu0 0.0
        %836 = vmatpush1.msra.mxu0 0.0
        %837 = vmatprep.subr.mxu0 0.0
        %838 = vmatpush1.msra.mxu0 0.0
        %839 = vmatprep.subr.mxu0 0.0
        %840 = vmatpush1.msra.mxu0 0.0
        %841 = vmatprep.subr.mxu0 0.0
        %842 = vmatpush1.msra.mxu0 %v813
        %843 = vmatprep.subr.mxu0 0.0
        %844 = vmatpush1.msra.mxu0 %v812
        %845 = vmatprep.subr.mxu0 0.0
        %846 = vmatpush1.msra.mxu0 %v811
        %847 = vmatprep.subr.mxu0 0.0
        %848 = vmatpush1.msra.mxu0 %v810
        %849 = vmatprep.subr.mxu0 0.0
        %850 = vmatpush1.msra.mxu0 %v809
        %851 = vmatprep.subr.mxu0 0.0
        %852 = vmatpush1.msra.mxu0 %v808
        %853 = vmatprep.subr.mxu0 0.0
        %854 = vmatpush1.msra.mxu0 %v807
        %855 = vmatprep.subr.mxu0 0.0
        %856 = vmatpush1.msra.mxu0 %v806
        %857 = vmatprep.subr.mxu0 0.0
        %858 = vmatpush2.msra.mxu0 0.0
        %859 = vmatprep.subr.mxu0 0.0
        %860 = vmatpush2.msra.mxu0 0.0
        %861 = vmatprep.subr.mxu0 0.0
        %862 = vmatpush2.msra.mxu0 0.0
        %863 = vmatprep.subr.mxu0 0.0
        %864 = vmatpush2.msra.mxu0 0.0
        %865 = vmatprep.subr.mxu0 0.0
        %866 = vmatpush2.msra.mxu0 0.0
        %867 = vmatprep.subr.mxu0 0.0
        %868 = vmatpush2.msra.mxu0 0.0
        %869 = vmatprep.subr.mxu0 0.0
        %870 = vmatpush2.msra.mxu0 0.0
        %871 = vmatprep.subr.mxu0 0.0
        %872 = vmatpush2.msra.mxu0 0.0
        %873 = vmatprep.subr.mxu0 0.0
        %874 = vmatpush2.msra.mxu0 0.0
        %875 = vmatprep.subr.mxu0 0.0
        %876 = vmatpush2.msra.mxu0 0.0
        %877 = vmatprep.subr.mxu0 0.0
        %878 = vmatpush2.msra.mxu0 0.0
        %879 = vmatprep.subr.mxu0 0.0
        %880 = vmatpush2.msra.mxu0 0.0
        %881 = vmatprep.subr.mxu0 0.0
        %882 = vmatpush2.msra.mxu0 0.0
        %883 = vmatprep.subr.mxu0 0.0
        %884 = vmatpush2.msra.mxu0 0.0
        %885 = vmatprep.subr.mxu0 0.0
        %886 = vmatpush2.msra.mxu0 0.0
        %887 = vmatprep.subr.mxu0 0.0
        %888 = vmatpush2.msra.mxu0 0.0
        %889 = vmatprep.mubr.f32.mxu0 0.0
        %890 = vmatmul.mubr.f32.gmra.mxu0 %v823
        %v891 = vpop.f32.mrf.mxu0
        %v892 = vadd.f32 %v819, %v891
        %v893 = vpop.f32.mrf.mxu0
        %894 = vdwg.mxu0
        %vm895 = vcmp.gt.f32.partialorder %v892, 0.0
        %v896 = vmul.f32 %v892, 0.1
        %v897 = vsel %vm895, %v892, %v896
        %898 = vst.msk [vmem:[%s589] sm:$0xf] %vm804, %v897
        %v899 = vld [vmem:[%s4] sm:$0xff]
        %v900 = vld [vmem:[%s4 + $0x8] sm:$0xff]
        %v901 = vld [vmem:[%s4 + $0x10] sm:$0xff]
        %v902 = vld [vmem:[%s4 + $0x18] sm:$0xff]
        %v903 = vld [vmem:[%s4 + $0x20] sm:$0xff]
        %v904 = vld [vmem:[%s4 + $0x28] sm:$0xff]
        %v905 = vld [vmem:[%s4 + $0x30] sm:$0xff]
        %v906 = vld [vmem:[%s4 + $0x38] sm:$0xff]
        %v907 = vld [vmem:[%s10] sm:$0x1]
        %v909 = vlaneseq
        %v910 = vshrl.u32 %v909, 7
        %v911 = vsub.s32 0, %v910
        %v912 = vrot.slane %v907, %v911
        %v915 = vsel %vm821, %v897, 0
        %917 = vmatprep.subr.mxu0 0.0
        %918 = vmatpush1.msra.mxu0 0.0
        %919 = vmatprep.subr.mxu0 0.0
        %920 = vmatpush1.msra.mxu0 0.0
        %921 = vmatprep.subr.mxu0 0.0
        %922 = vmatpush1.msra.mxu0 0.0
        %923 = vmatprep.subr.mxu0 0.0
        %924 = vmatpush1.msra.mxu0 0.0
        %925 = vmatprep.subr.mxu0 0.0
        %926 = vmatpush1.msra.mxu0 0.0
        %927 = vmatprep.subr.mxu0 0.0
        %928 = vmatpush1.msra.mxu0 0.0
        %929 = vmatprep.subr.mxu0 0.0
        %930 = vmatpush1.msra.mxu0 0.0
        %931 = vmatprep.subr.mxu0 0.0
        %932 = vmatpush1.msra.mxu0 0.0
        %933 = vmatprep.subr.mxu0 0.0
        %934 = vmatpush1.msra.mxu0 %v906
        %935 = vmatprep.subr.mxu0 0.0
        %936 = vmatpush1.msra.mxu0 %v905
        %937 = vmatprep.subr.mxu0 0.0
        %938 = vmatpush1.msra.mxu0 %v904
        %939 = vmatprep.subr.mxu0 0.0
        %940 = vmatpush1.msra.mxu0 %v903
        %941 = vmatprep.subr.mxu0 0.0
        %942 = vmatpush1.msra.mxu0 %v902
        %943 = vmatprep.subr.mxu0 0.0
        %944 = vmatpush1.msra.mxu0 %v901
        %945 = vmatprep.subr.mxu0 0.0
        %946 = vmatpush1.msra.mxu0 %v900
        %947 = vmatprep.subr.mxu0 0.0
        %948 = vmatpush1.msra.mxu0 %v899
        %949 = vmatprep.subr.mxu0 0.0
        %950 = vmatpush2.msra.mxu0 0.0
        %951 = vmatprep.subr.mxu0 0.0
        %952 = vmatpush2.msra.mxu0 0.0
        %953 = vmatprep.subr.mxu0 0.0
        %954 = vmatpush2.msra.mxu0 0.0
        %955 = vmatprep.subr.mxu0 0.0
        %956 = vmatpush2.msra.mxu0 0.0
        %957 = vmatprep.subr.mxu0 0.0
        %958 = vmatpush2.msra.mxu0 0.0
        %959 = vmatprep.subr.mxu0 0.0
        %960 = vmatpush2.msra.mxu0 0.0
        %961 = vmatprep.subr.mxu0 0.0
        %962 = vmatpush2.msra.mxu0 0.0
        %963 = vmatprep.subr.mxu0 0.0
        %964 = vmatpush2.msra.mxu0 0.0
        %965 = vmatprep.subr.mxu0 0.0
        %966 = vmatpush2.msra.mxu0 0.0
        %967 = vmatprep.subr.mxu0 0.0
        %968 = vmatpush2.msra.mxu0 0.0
        %969 = vmatprep.subr.mxu0 0.0
        %970 = vmatpush2.msra.mxu0 0.0
        %971 = vmatprep.subr.mxu0 0.0
        %972 = vmatpush2.msra.mxu0 0.0
        %973 = vmatprep.subr.mxu0 0.0
        %974 = vmatpush2.msra.mxu0 0.0
        %975 = vmatprep.subr.mxu0 0.0
        %976 = vmatpush2.msra.mxu0 0.0
        %977 = vmatprep.subr.mxu0 0.0
        %978 = vmatpush2.msra.mxu0 0.0
        %979 = vmatprep.subr.mxu0 0.0
        %980 = vmatpush2.msra.mxu0 0.0
        %981 = vmatprep.mubr.f32.mxu0 0.0
        %982 = vmatmul.mubr.f32.gmra.mxu0 %v915
        %v983 = vpop.f32.mrf.mxu0
        %v984 = vadd.f32 %v912, %v983
        %v985 = vpop.f32.mrf.mxu0
        %986 = vdwg.mxu0
        %vm987 = vcmp.gt.f32.partialorder %v984, 0.0
        %v988 = vmul.f32 %v984, 0.1
        %v989 = vsel %vm987, %v984, %v988
        %vm990 = vcmask 257024
        %991 = vst.msk [vmem:[%s596] sm:$0xf] %vm990, %v989
        %v992 = vld [vmem:[%s5] sm:$0xff]
        %v993 = vld [vmem:[%s5 + $0x8] sm:$0xff]
        %v994 = vld [vmem:[%s5 + $0x10] sm:$0xff]
        %v995 = vld [vmem:[%s5 + $0x18] sm:$0xff]
        %v996 = vld [vmem:[%s11] sm:$0x1]
        %v998 = vlaneseq
        %v999 = vshrl.u32 %v998, 7
        %v1000 = vsub.s32 0, %v999
        %v1001 = vrot.slane %v996, %v1000
        %v1004 = vsel %vm630, %v989, 0
        %1006 = vmatprep.subr.mxu0 0.0
        %1007 = vmatpush1.msra.mxu0 0.0
        %1008 = vmatprep.subr.mxu0 0.0
        %1009 = vmatpush1.msra.mxu0 0.0
        %1010 = vmatprep.subr.mxu0 0.0
        %1011 = vmatpush1.msra.mxu0 0.0
        %1012 = vmatprep.subr.mxu0 0.0
        %1013 = vmatpush1.msra.mxu0 0.0
        %1014 = vmatprep.subr.mxu0 0.0
        %1015 = vmatpush1.msra.mxu0 0.0
        %1016 = vmatprep.subr.mxu0 0.0
        %1017 = vmatpush1.msra.mxu0 0.0
        %1018 = vmatprep.subr.mxu0 0.0
        %1019 = vmatpush1.msra.mxu0 0.0
        %1020 = vmatprep.subr.mxu0 0.0
        %1021 = vmatpush1.msra.mxu0 0.0
        %1022 = vmatprep.subr.mxu0 0.0
        %1023 = vmatpush1.msra.mxu0 0.0
        %1024 = vmatprep.subr.mxu0 0.0
        %1025 = vmatpush1.msra.mxu0 0.0
        %1026 = vmatprep.subr.mxu0 0.0
        %1027 = vmatpush1.msra.mxu0 0.0
        %1028 = vmatprep.subr.mxu0 0.0
        %1029 = vmatpush1.msra.mxu0 0.0
        %1030 = vmatprep.subr.mxu0 0.0
        %1031 = vmatpush1.msra.mxu0 %v995
        %1032 = vmatprep.subr.mxu0 0.0
        %1033 = vmatpush1.msra.mxu0 %v994
        %1034 = vmatprep.subr.mxu0 0.0
        %1035 = vmatpush1.msra.mxu0 %v993
        %1036 = vmatprep.subr.mxu0 0.0
        %1037 = vmatpush1.msra.mxu0 %v992
        %1038 = vmatprep.subr.mxu0 0.0
        %1039 = vmatpush2.msra.mxu0 0.0
        %1040 = vmatprep.subr.mxu0 0.0
        %1041 = vmatpush2.msra.mxu0 0.0
        %1042 = vmatprep.subr.mxu0 0.0
        %1043 = vmatpush2.msra.mxu0 0.0
        %1044 = vmatprep.subr.mxu0 0.0
        %1045 = vmatpush2.msra.mxu0 0.0
        %1046 = vmatprep.subr.mxu0 0.0
        %1047 = vmatpush2.msra.mxu0 0.0
        %1048 = vmatprep.subr.mxu0 0.0
        %1049 = vmatpush2.msra.mxu0 0.0
        %1050 = vmatprep.subr.mxu0 0.0
        %1051 = vmatpush2.msra.mxu0 0.0
        %1052 = vmatprep.subr.mxu0 0.0
        %1053 = vmatpush2.msra.mxu0 0.0
        %1054 = vmatprep.subr.mxu0 0.0
        %1055 = vmatpush2.msra.mxu0 0.0
        %1056 = vmatprep.subr.mxu0 0.0
        %1057 = vmatpush2.msra.mxu0 0.0
        %1058 = vmatprep.subr.mxu0 0.0
        %1059 = vmatpush2.msra.mxu0 0.0
        %1060 = vmatprep.subr.mxu0 0.0
        %1061 = vmatpush2.msra.mxu0 0.0
        %1062 = vmatprep.subr.mxu0 0.0
        %1063 = vmatpush2.msra.mxu0 0.0
        %1064 = vmatprep.subr.mxu0 0.0
        %1065 = vmatpush2.msra.mxu0 0.0
        %1066 = vmatprep.subr.mxu0 0.0
        %1067 = vmatpush2.msra.mxu0 0.0
        %1068 = vmatprep.subr.mxu0 0.0
        %1069 = vmatpush2.msra.mxu0 0.0
        %1070 = vmatprep.mubr.f32.mxu0 0.0
        %1071 = vmatmul.mubr.f32.gmra.mxu0 %v1004
        %v1072 = vpop.f32.mrf.mxu0
        %v1073 = vadd.f32 %v1001, %v1072
        %v1074 = vpop.f32.mrf.mxu0
        %1075 = vdwg.mxu0
        %vm1076 = vcmp.gt.f32.partialorder %v1073, 0.0
        %v1077 = vmul.f32 %v1073, 0.1
        %v1078 = vsel %vm1076, %v1073, %v1077
        %1079 = vst.msk [vmem:[%s603] sm:$0xf] %vm990, %v1078
        %v1080 = vld [vmem:[%s6] sm:$0xff]
        %v1081 = vld [vmem:[%s6 + $0x8] sm:$0xff]
        %v1082 = vld [vmem:[%s6 + $0x10] sm:$0xff]
        %v1083 = vld [vmem:[%s6 + $0x18] sm:$0xff]
        %v1084 = vld [vmem:[#allocation2] sm:$0x1]
        %v1086 = vlaneseq
        %v1087 = vshrl.u32 %v1086, 7
        %v1088 = vsub.s32 0, %v1087
        %v1089 = vrot.slane %v1084, %v1088
        %v1092 = vsel %vm630, %v1078, 0
        %1094 = vmatprep.subr.mxu0 0.0
        %1095 = vmatpush1.msra.mxu0 0.0
        %1096 = vmatprep.subr.mxu0 0.0
        %1097 = vmatpush1.msra.mxu0 0.0
        %1098 = vmatprep.subr.mxu0 0.0
        %1099 = vmatpush1.msra.mxu0 0.0
        %1100 = vmatprep.subr.mxu0 0.0
        %1101 = vmatpush1.msra.mxu0 0.0
        %1102 = vmatprep.subr.mxu0 0.0
        %1103 = vmatpush1.msra.mxu0 0.0
        %1104 = vmatprep.subr.mxu0 0.0
        %1105 = vmatpush1.msra.mxu0 0.0
        %1106 = vmatprep.subr.mxu0 0.0
        %1107 = vmatpush1.msra.mxu0 0.0
        %1108 = vmatprep.subr.mxu0 0.0
        %1109 = vmatpush1.msra.mxu0 0.0
        %1110 = vmatprep.subr.mxu0 0.0
        %1111 = vmatpush1.msra.mxu0 0.0
        %1112 = vmatprep.subr.mxu0 0.0
        %1113 = vmatpush1.msra.mxu0 0.0
        %1114 = vmatprep.subr.mxu0 0.0
        %1115 = vmatpush1.msra.mxu0 0.0
        %1116 = vmatprep.subr.mxu0 0.0
        %1117 = vmatpush1.msra.mxu0 0.0
        %1118 = vmatprep.subr.mxu0 0.0
        %1119 = vmatpush1.msra.mxu0 %v1083
        %1120 = vmatprep.subr.mxu0 0.0
        %1121 = vmatpush1.msra.mxu0 %v1082
        %1122 = vmatprep.subr.mxu0 0.0
        %1123 = vmatpush1.msra.mxu0 %v1081
        %1124 = vmatprep.subr.mxu0 0.0
        %1125 = vmatpush1.msra.mxu0 %v1080
        %1126 = vmatprep.subr.mxu0 0.0
        %1127 = vmatpush2.msra.mxu0 0.0
        %1128 = vmatprep.subr.mxu0 0.0
        %1129 = vmatpush2.msra.mxu0 0.0
        %1130 = vmatprep.subr.mxu0 0.0
        %1131 = vmatpush2.msra.mxu0 0.0
        %1132 = vmatprep.subr.mxu0 0.0
        %1133 = vmatpush2.msra.mxu0 0.0
        %1134 = vmatprep.subr.mxu0 0.0
        %1135 = vmatpush2.msra.mxu0 0.0
        %1136 = vmatprep.subr.mxu0 0.0
        %1137 = vmatpush2.msra.mxu0 0.0
        %1138 = vmatprep.subr.mxu0 0.0
        %1139 = vmatpush2.msra.mxu0 0.0
        %1140 = vmatprep.subr.mxu0 0.0
        %1141 = vmatpush2.msra.mxu0 0.0
        %1142 = vmatprep.subr.mxu0 0.0
        %1143 = vmatpush2.msra.mxu0 0.0
        %1144 = vmatprep.subr.mxu0 0.0
        %1145 = vmatpush2.msra.mxu0 0.0
        %1146 = vmatprep.subr.mxu0 0.0
        %1147 = vmatpush2.msra.mxu0 0.0
        %1148 = vmatprep.subr.mxu0 0.0
        %1149 = vmatpush2.msra.mxu0 0.0
        %1150 = vmatprep.subr.mxu0 0.0
        %1151 = vmatpush2.msra.mxu0 0.0
        %1152 = vmatprep.subr.mxu0 0.0
        %1153 = vmatpush2.msra.mxu0 0.0
        %1154 = vmatprep.subr.mxu0 0.0
        %1155 = vmatpush2.msra.mxu0 0.0
        %1156 = vmatprep.subr.mxu0 0.0
        %1157 = vmatpush2.msra.mxu0 0.0
        %1158 = vmatprep.mubr.f32.mxu0 0.0
        %1159 = vmatmul.mubr.f32.gmra.mxu0 %v1092
        %v1160 = vpop.f32.mrf.mxu0
        %v1161 = vadd.f32 %v1089, %v1160
        %v1162 = vpop.f32.mrf.mxu0
        %1163 = vdwg.mxu0
        %vm1164 = vcmask 3072
        %1165 = vst.msk [vmem:[%s617] sm:$0xf] %vm1164, %v1161
        %s1166 = sand.u32 %s327, 1
        %s1167 = scalar_lea.sflag [#allocation4], %s1166
        %s1168 = sand.u32 %s327, 1
        %s1169 = smul.addr %s1168, 4
        %s1170 = scalar_lea.vmem [#allocation3], %s1169
        %s1171 = sand.u32 %s41, 1
        %s1172 = scalar_lea.sflag [#allocation6], %s1171
        %s1173 = sand.u32 %s353, 1
        %s1174 = smul.addr %s1173, 4
        %s1175 = scalar_lea.vmem [#allocation5], %s1174
        %s1176 = sand.u32 %s41, 1
        %s1177 = scalar_lea.sflag [#allocation6], %s1176
        %s1178 = sand.u32 %s379, 1
        %s1179 = smul.addr %s1178, 4
        %s1180 = scalar_lea.vmem [#allocation7], %s1179
        %s1181 = sand.u32 %s41, 1
        %s1182 = scalar_lea.sflag [#allocation9], %s1181
        %s1183 = sand.u32 %s405, 1
        %s1184 = smul.addr %s1183, 4
        %s1185 = scalar_lea.vmem [#allocation8], %s1184
        %s1186 = sand.u32 %s41, 1
        %s1187 = scalar_lea.sflag [#allocation9], %s1186
        %s1188 = sand.u32 %s431, 1
        %s1189 = smul.addr %s1188, 4
        %s1190 = scalar_lea.vmem [#allocation10], %s1189
        %p1191 = scmp.lt.s32.totalorder %s41, 1
        %s1192 = scalar_select %p1191, %s41, 1
        %s1193 = smul.addr %s1192, 4
        %s1194 = scalar_lea.vmem %s18, %s1193
        // Predicated region
        $region73: #{tpu_custom_call.1} parent=71 // pred_check
          %p1195 = pneg %p337
        $region74: #{tpu_custom_call.1} parent=71 // pred_check_branch
          %1197 = sbr.rel (%p1195) target = $region76
        $region75: #{tpu_custom_call.1} parent=71 // pred_region
          %s1199 = ssub.s32 64, 64
          %1200 = vsyncadd %s1167, %s1199
          %s1201 = smul.addr %s41, 64
          %s1202 = scalar_lea.hbm %s13, %s1201
          %s1204 = sshll.u32 %s1170, 4
          %s1205 = int_to_ptr.vmem [resolvable:$true] %s1204
          %1207 = dma.vmem_to_hbm [thread:$0]  %s1205, 64, %s1202, %s1167
        $region76: #{tpu_custom_call.1} parent=71 // pred_fallthru
          _
        // Predicated region
        $region77: #{tpu_custom_call.1} parent=71 // pred_check
          %p1208 = pneg %p363
        $region78: #{tpu_custom_call.1} parent=71 // pred_check_branch
          %1210 = sbr.rel (%p1208) target = $region80
        $region79: #{tpu_custom_call.1} parent=71 // pred_region
          %s1212 = ssub.s32 64, 64
          %1213 = vsyncadd %s1172, %s1212
          %s1214 = smul.addr %s41, 64
          %s1215 = scalar_lea.hbm %s14, %s1214
          %s1217 = sshll.u32 %s1175, 4
          %s1218 = int_to_ptr.vmem [resolvable:$true] %s1217
          %1220 = dma.vmem_to_hbm [thread:$0]  %s1218, 64, %s1215, %s1172
        $region80: #{tpu_custom_call.1} parent=71 // pred_fallthru
          _
        // Predicated region
        $region81: #{tpu_custom_call.1} parent=71 // pred_check
          %p1221 = pneg %p389
        $region82: #{tpu_custom_call.1} parent=71 // pred_check_branch
          %1223 = sbr.rel (%p1221) target = $region84
        $region83: #{tpu_custom_call.1} parent=71 // pred_region
          %s1225 = ssub.s32 64, 64
          %1226 = vsyncadd %s1177, %s1225
          %s1227 = smul.addr %s41, 64
          %s1228 = scalar_lea.hbm %s15, %s1227
          %s1230 = sshll.u32 %s1180, 4
          %s1231 = int_to_ptr.vmem [resolvable:$true] %s1230
          %1233 = dma.vmem_to_hbm [thread:$0]  %s1231, 64, %s1228, %s1177
        $region84: #{tpu_custom_call.1} parent=71 // pred_fallthru
          _
        // Predicated region
        $region85: #{tpu_custom_call.1} parent=71 // pred_check
          %p1234 = pneg %p415
        $region86: #{tpu_custom_call.1} parent=71 // pred_check_branch
          %1236 = sbr.rel (%p1234) target = $region88
        $region87: #{tpu_custom_call.1} parent=71 // pred_region
          %s1238 = ssub.s32 64, 64
          %1239 = vsyncadd %s1182, %s1238
          %s1240 = smul.addr %s41, 64
          %s1241 = scalar_lea.hbm %s16, %s1240
          %s1243 = sshll.u32 %s1185, 4
          %s1244 = int_to_ptr.vmem [resolvable:$true] %s1243
          %1246 = dma.vmem_to_hbm [thread:$0]  %s1244, 64, %s1241, %s1182
        $region88: #{tpu_custom_call.1} parent=71 // pred_fallthru
          _
        // Predicated region
        $region89: #{tpu_custom_call.1} parent=71 // pred_check
          %p1247 = pneg %p441
        $region90: #{tpu_custom_call.1} parent=71 // pred_check_branch
          %1249 = sbr.rel (%p1247) target = $region92
        $region91: #{tpu_custom_call.1} parent=71 // pred_region
          %s1251 = ssub.s32 64, 64
          %1252 = vsyncadd %s1187, %s1251
          %s1253 = smul.addr %s41, 64
          %s1254 = scalar_lea.hbm %s17, %s1253
          %s1256 = sshll.u32 %s1190, 4
          %s1257 = int_to_ptr.vmem [resolvable:$true] %s1256
          %1259 = dma.vmem_to_hbm [thread:$0]  %s1257, 64, %s1254, %s1187
        $region92: #{tpu_custom_call.1} parent=71 // pred_fallthru
          _
        // Predicated region
        $region93: #{tpu_custom_call.1} parent=71 // pred_check
          %p1260 = pneg %p467
        $region94: #{tpu_custom_call.1} parent=71 // pred_check_branch
          %1262 = sbr.rel (%p1260) target = $region96
        $region95: #{tpu_custom_call.1} parent=71 // pred_region
          _
        $region96: #{tpu_custom_call.1} parent=71 // pred_fallthru
          _
      $region72: #{tpu_custom_call.1} parent=5 // pred_fallthru
        _
      %p1263 = scmp.le.s32.totalorder 2, %s36
      // Predicated region
      $region97: #{tpu_custom_call.1} parent=5 // pred_check
        %p1264 = pneg %p1263
      $region98: #{tpu_custom_call.1} parent=5 // pred_check_branch
        %1266 = sbr.rel (%p1264) target = $region100
      $region99: #{tpu_custom_call.1} parent=5 // pred_region
        %s1267 = ssub.s32 %s36, 2
        // Predicated region
        $region101: #{tpu_custom_call.1} parent=99 // pred_check
          %p1268 = pneg %p343
        $region102: #{tpu_custom_call.1} parent=99 // pred_check_branch
          %1270 = sbr.rel (%p1268) target = $region104
        $region103: #{tpu_custom_call.1} parent=99 // pred_region
          %s1271 = sand.u32 %s328, 1
          %s1272 = scalar_lea.sflag [#allocation4], %s1271
          %s1273 = sand.u32 %s328, 1
          %s1274 = smul.addr %s1273, 4
          %s1275 = scalar_lea.vmem [#allocation3], %s1274
          %1276 = dma.done %s1272, 64
        $region104: #{tpu_custom_call.1} parent=99 // pred_fallthru
          _
        // Predicated region
        $region105: #{tpu_custom_call.1} parent=99 // pred_check
          %p1277 = pneg %p369
        $region106: #{tpu_custom_call.1} parent=99 // pred_check_branch
          %1279 = sbr.rel (%p1277) target = $region108
        $region107: #{tpu_custom_call.1} parent=99 // pred_region
          %s1280 = sand.u32 %s42, 1
          %s1281 = scalar_lea.sflag [#allocation6], %s1280
          %s1282 = sand.u32 %s354, 1
          %s1283 = smul.addr %s1282, 4
          %s1284 = scalar_lea.vmem [#allocation5], %s1283
          %1285 = dma.done %s1281, 64
        $region108: #{tpu_custom_call.1} parent=99 // pred_fallthru
          _
        // Predicated region
        $region109: #{tpu_custom_call.1} parent=99 // pred_check
          %p1286 = pneg %p395
        $region110: #{tpu_custom_call.1} parent=99 // pred_check_branch
          %1288 = sbr.rel (%p1286) target = $region112
        $region111: #{tpu_custom_call.1} parent=99 // pred_region
          %s1289 = sand.u32 %s42, 1
          %s1290 = scalar_lea.sflag [#allocation6], %s1289
          %s1291 = sand.u32 %s380, 1
          %s1292 = smul.addr %s1291, 4
          %s1293 = scalar_lea.vmem [#allocation7], %s1292
          %1294 = dma.done %s1290, 64
        $region112: #{tpu_custom_call.1} parent=99 // pred_fallthru
          _
        // Predicated region
        $region113: #{tpu_custom_call.1} parent=99 // pred_check
          %p1295 = pneg %p421
        $region114: #{tpu_custom_call.1} parent=99 // pred_check_branch
          %1297 = sbr.rel (%p1295) target = $region116
        $region115: #{tpu_custom_call.1} parent=99 // pred_region
          %s1298 = sand.u32 %s42, 1
          %s1299 = scalar_lea.sflag [#allocation9], %s1298
          %s1300 = sand.u32 %s406, 1
          %s1301 = smul.addr %s1300, 4
          %s1302 = scalar_lea.vmem [#allocation8], %s1301
          %1303 = dma.done %s1299, 64
        $region116: #{tpu_custom_call.1} parent=99 // pred_fallthru
          _
        // Predicated region
        $region117: #{tpu_custom_call.1} parent=99 // pred_check
          %p1304 = pneg %p447
        $region118: #{tpu_custom_call.1} parent=99 // pred_check_branch
          %1306 = sbr.rel (%p1304) target = $region120
        $region119: #{tpu_custom_call.1} parent=99 // pred_region
          %s1307 = sand.u32 %s42, 1
          %s1308 = scalar_lea.sflag [#allocation9], %s1307
          %s1309 = sand.u32 %s432, 1
          %s1310 = smul.addr %s1309, 4
          %s1311 = scalar_lea.vmem [#allocation10], %s1310
          %1312 = dma.done %s1308, 64
        $region120: #{tpu_custom_call.1} parent=99 // pred_fallthru
          _
        // Predicated region
        $region121: #{tpu_custom_call.1} parent=99 // pred_check
          %p1313 = pneg %p473
        $region122: #{tpu_custom_call.1} parent=99 // pred_check_branch
          %1315 = sbr.rel (%p1313) target = $region124
        $region123: #{tpu_custom_call.1} parent=99 // pred_region
          %p1316 = scmp.lt.s32.totalorder %s42, 1
          %s1317 = scalar_select %p1316, %s42, 1
          %s1318 = smul.addr %s1317, 4
          %s1319 = scalar_lea.vmem %s18, %s1318
        $region124: #{tpu_custom_call.1} parent=99 // pred_fallthru
          _
      $region100: #{tpu_custom_call.1} parent=5 // pred_fallthru
        _
    $region6: #{tpu_custom_call.1} parent=1 // loop_footer
      %s40 = sadd.s32 1, %s36
    $region7: #{tpu_custom_call.1} parent=1 // loop_footer_branch
      %35 = sbr.rel target = $region3
    $region8: #{tpu_custom_call.1} parent=1 // loop_exit
      _
    %1320 = vsyncpa [#allocation4], 1
    %s1321 = scalar_lea.sflag [#allocation4], 1
    %1322 = vsyncpa %s1321, 1
    %1323 = vsyncpa [#allocation6], 1
    %s1324 = scalar_lea.sflag [#allocation6], 1
    %1325 = vsyncpa %s1324, 1
    %1326 = vsyncpa [#allocation9], 1
    %s1327 = scalar_lea.sflag [#allocation9], 1
    %1328 = vsyncpa %s1327, 1

</llo_original>
